<compile_context>
chip_gen: v5e
topology: v5e:2x2
jax: 0.10.0
libtpu: 0.0.40
codegen_flags: <defaults>
</compile_context>

<pallas_src>
import functools

import jax
import jax.numpy as jnp
from jax.experimental import pallas as pl
from jax.experimental.pallas import tpu as pltpu


# ----------------------------------------------------------------------------
# helpers
# ----------------------------------------------------------------------------
def _round_up(x, m):
    return (x + m - 1) // m * m


def _pick_tile(dim, target):
    """target if it evenly divides dim, else the full dim (always legal)."""
    return target if (dim >= target and dim % target == 0) else dim


# ----------------------------------------------------------------------------
# Tiled linear kernel: (M, K) @ (K, N) [+ b] [gelu]  -> (M, N)
# ----------------------------------------------------------------------------
def _linear_kernel(*refs, has_bias, activation):
    if has_bias:
        x_ref, w_ref, b_ref, o_ref, acc_ref = refs
    else:
        x_ref, w_ref, o_ref, acc_ref = refs
        b_ref = None

    k = pl.program_id(2)

    @pl.when(k == 0)
    def _():
        acc_ref[...] = jnp.zeros_like(acc_ref)

    acc_ref[...] += jnp.dot(
        x_ref[...], w_ref[...], preferred_element_type=jnp.float32
    )

    @pl.when(k == pl.num_programs(2) - 1)
    def _():
        r = acc_ref[...]
        if b_ref is not None:
            r = r + b_ref[...]
        if activation == "gelu":
            # tanh-approximate GELU (PyTorch nn.GELU is exact erf; diff < 1e-3)
            r = jax.nn.gelu(r, approximate=True)
        o_ref[...] = r.astype(o_ref.dtype)


def linear(x2d, w, b=None, activation=None, out_dtype=jnp.float32,
           tm=256, tn=256, tk=256):
    """bf16 MXU matmul with f32 accumulation, tiled & double-buffered."""
    M, K = x2d.shape
    Kw, N = w.shape
    assert K == Kw

    tm = min(tm, _round_up(M, 8))
    Mp = _round_up(M, tm)
    tn = _pick_tile(N, tn)
    tk = _pick_tile(K, tk)

    if Mp != M:
        x2d = jnp.pad(x2d, ((0, Mp - M), (0, 0)))

    x2d = x2d.astype(jnp.bfloat16)
    w = w.astype(jnp.bfloat16)

    grid = (Mp // tm, N // tn, K // tk)

    in_specs = [
        pl.BlockSpec((tm, tk), lambda i, j, k: (i, k)),
        pl.BlockSpec((tk, tn), lambda i, j, k: (k, j)),
    ]
    args = [x2d, w]
    has_bias = b is not None
    if has_bias:
        in_specs.append(pl.BlockSpec((1, tn), lambda i, j, k: (0, j)))
        args.append(b.reshape(1, N).astype(jnp.float32))

    kernel = functools.partial(
        _linear_kernel, has_bias=has_bias, activation=activation)

    out_itemsize = jnp.dtype(out_dtype).itemsize
    cost = pl.CostEstimate(
        flops=2 * Mp * K * N,
        transcendentals=(Mp * N) if activation == "gelu" else 0,
        bytes_accessed=Mp * K * 2 + K * N * 2 + Mp * N * out_itemsize,
    )

    out = pl.pallas_call(
        kernel,
        out_shape=jax.ShapeDtypeStruct((Mp, N), out_dtype),
        grid_spec=pltpu.PrefetchScalarGridSpec(
            num_scalar_prefetch=0,
            grid=grid,
            in_specs=in_specs,
            out_specs=pl.BlockSpec((tm, tn), lambda i, j, k: (i, j)),
            scratch_shapes=[pltpu.VMEM((tm, tn), jnp.float32)],
        ),
        compiler_params=pltpu.CompilerParams(
            dimension_semantics=("parallel", "parallel", "arbitrary"),
            vmem_limit_bytes=32 * 1024 * 1024,
        ),
        cost_estimate=cost,
    )(*args)
    return out[:M] if Mp != M else out


# ----------------------------------------------------------------------------
# LayerNorm kernel (rows tiled, full feature dim per block)
# ----------------------------------------------------------------------------
def _layernorm_kernel(x_ref, g_ref, b_ref, o_ref, *, eps):
    x = x_ref[...].astype(jnp.float32)
    mu = jnp.mean(x, axis=-1, keepdims=True)
    xc = x - mu
    var = jnp.mean(xc * xc, axis=-1, keepdims=True)
    inv = jax.lax.rsqrt(var + eps)
    o_ref[...] = (xc * inv * g_ref[...] + b_ref[...]).astype(o_ref.dtype)


def layernorm(x2d, gamma, beta, eps=1e-5, tm=512):
    M, E = x2d.shape
    tm = min(tm, _round_up(M, 8))
    Mp = _round_up(M, tm)
    if Mp != M:
        x2d = jnp.pad(x2d, ((0, Mp - M), (0, 0)))
    out = pl.pallas_call(
        functools.partial(_layernorm_kernel, eps=eps),
        out_shape=jax.ShapeDtypeStruct((Mp, E), jnp.float32),
        grid_spec=pltpu.PrefetchScalarGridSpec(
            num_scalar_prefetch=0,
            grid=(Mp // tm,),
            in_specs=[
                pl.BlockSpec((tm, E), lambda i: (i, 0)),
                pl.BlockSpec((1, E), lambda i: (0, 0)),
                pl.BlockSpec((1, E), lambda i: (0, 0)),
            ],
            out_specs=pl.BlockSpec((tm, E), lambda i: (i, 0)),
        ),
        compiler_params=pltpu.CompilerParams(
            dimension_semantics=("parallel",)),
    )(x2d, gamma.reshape(1, E), beta.reshape(1, E))
    return out[:M] if Mp != M else out


# ----------------------------------------------------------------------------
# Multi-head attention kernel: qkv in (B, N, 3E) layout, output (B, N, E)
# (head split/merge is done by in-kernel column slicing; no HBM transposes)
# ----------------------------------------------------------------------------
def _mha_kernel(qkv_ref, o_ref, *, num_heads, scale):
    E = o_ref.shape[-1]
    D = E // num_heads
    qkv = qkv_ref[0]                                   # (N, 3E), bf16, lane-dense
    for h in range(num_heads):
        q = qkv[:, h * D:(h + 1) * D] * scale          # scale folded into q
        k = qkv[:, E + h * D:E + (h + 1) * D]
        v = qkv[:, 2 * E + h * D:2 * E + (h + 1) * D]
        # q @ k^T without materializing a transpose of k
        s = jax.lax.dot_general(
            q, k, (((1,), (1,)), ((), ())),
            preferred_element_type=jnp.float32)        # (N, N) f32 scores
        s = s - jnp.max(s, axis=-1, keepdims=True)
        p = jnp.exp(s)
        p = p * pl.reciprocal(jnp.sum(p, axis=-1, keepdims=True), approx=True)
        o = jnp.dot(p.astype(qkv.dtype), v, preferred_element_type=jnp.float32)
        o_ref[0, :, h * D:(h + 1) * D] = o.astype(o_ref.dtype)


def multi_head_attention(qkv, num_heads, scale):
    """qkv: (B, N, 3E) bf16 -> (B, N, E) f32."""
    B, N, E3 = qkv.shape
    E = E3 // 3
    D = E // num_heads
    cost = pl.CostEstimate(
        flops=4 * B * num_heads * N * N * D,
        transcendentals=B * num_heads * N * N,
        bytes_accessed=B * N * E3 * 2 + B * N * E * 4,
    )
    return pl.pallas_call(
        functools.partial(_mha_kernel, num_heads=num_heads, scale=scale),
        out_shape=jax.ShapeDtypeStruct((B, N, E), jnp.float32),
        grid_spec=pltpu.PrefetchScalarGridSpec(
            num_scalar_prefetch=0,
            grid=(B,),
            in_specs=[pl.BlockSpec((1, N, E3), lambda b: (b, 0, 0))],
            out_specs=pl.BlockSpec((1, N, E), lambda b: (b, 0, 0)),
        ),
        compiler_params=pltpu.CompilerParams(
            dimension_semantics=("parallel",),
            vmem_limit_bytes=32 * 1024 * 1024,
        ),
        cost_estimate=cost,
    )(qkv)


# ----------------------------------------------------------------------------
# Module wrappers
# ----------------------------------------------------------------------------
def attention_block(x, p, num_heads):
    """Attention module: qkv Linear (no bias) -> MHSA -> proj Linear."""
    B, N, E = x.shape
    scale = float(E // num_heads) ** -0.5
    # qkv projection; bf16 output is consumed directly by the attention kernel
    qkv = linear(x.reshape(B * N, E), p["qkv_w"], b=None,
                 out_dtype=jnp.bfloat16)
    qkv = qkv.reshape(B, N, 3 * E)
    out = multi_head_attention(qkv, num_heads, scale)          # (B, N, E)
    out = linear(out.reshape(B * N, E), p["proj_w"], p["proj_b"])
    # TODO(synk): save_attn / save_q/k/v / register_hook(save_attgradients) are
    # PyTorch-side introspection & autograd-hook state with no Pallas analogue.
    return out.reshape(B, N, E)


def transformer_block(x, p, num_heads):
    B, N, E = x.shape
    h = layernorm(x.reshape(B * N, E), p["ln1_g"], p["ln1_b"]).reshape(B, N, E)
    x = x + attention_block(h, p, num_heads)
    h = layernorm(x.reshape(B * N, E), p["ln2_g"], p["ln2_b"])
    h = linear(h, p["fc1_w"], p["fc1_b"], activation="gelu")    # fused GELU
    h = linear(h, p["fc2_w"], p["fc2_b"])
    return x + h.reshape(B, N, E)


def patch_embed(image, params, patch_size, embed_dim):
    """Conv2d(k=P, stride=P) expressed as an im2col reshape + tiled matmul."""
    B, C, Hi, Wi = image.shape
    P = patch_size
    Hp, Wp = Hi // P, Wi // P
    patches = image.reshape(B, C, Hp, P, Wp, P)
    patches = jnp.transpose(patches, (0, 2, 4, 1, 3, 5))        # (B,Hp,Wp,C,P,P)
    patches = patches.reshape(B * Hp * Wp, C * P * P)
    x = linear(patches, params["patch_w"], params["patch_b"])
    return x.reshape(B, Hp * Wp, embed_dim)


def distilled_vit_forward(image, params, cfg):
    B = image.shape[0]
    E = cfg["embed_dim"]
    x = patch_embed(image, params, cfg["patch_size"], E)        # (B, P^2, E)
    cls = jnp.broadcast_to(params["cls_token"], (B, 1, E))
    dist = jnp.broadcast_to(params["dist_token"], (B, 1, E))
    x = jnp.concatenate([cls, dist, x], axis=1)                 # (B, P^2+2, E)
    x = x + params["pos_embed"]
    for blk in params["blocks"]:
        x = transformer_block(x, blk, cfg["num_heads"])
    _, N, _ = x.shape
    x = layernorm(x.reshape(B * N, E), params["norm_g"], params["norm_b"])
    x = x.reshape(B, N, E)
    cls_tok, dist_tok = x[:, 0], x[:, 1]
    logits = linear(cls_tok, params["head_w"], params["head_b"])
    logits_dist = linear(dist_tok, params["head_dist_w"], params["head_dist_b"])
    return (logits + logits_dist) / 2.0


# ----------------------------------------------------------------------------
# Synthetic parameters (shapes match the nn.Module; stored as (in, out))
# ----------------------------------------------------------------------------
def init_params(key, *, in_chans, patch_size, num_patches, embed_dim, depth,
                num_heads, mlp_ratio, num_classes):
    E = embed_dim
    hidden = int(E * mlp_ratio)
    Kp = in_chans * patch_size * patch_size
    keys = jax.random.split(key, 10 + depth)

    def dense(k, fan_in, shape):
        return jax.random.normal(k, shape, jnp.float32) * (fan_in ** -0.5)

    params = {
        "patch_w": dense(keys[0], Kp, (Kp, E)),
        "patch_b": jax.random.normal(keys[1], (E,), jnp.float32) * 0.02,
        "cls_token": jax.random.normal(keys[2], (1, 1, E), jnp.float32) * 0.02,
        "dist_token": jax.random.normal(keys[3], (1, 1, E), jnp.float32) * 0.02,
        "pos_embed": jax.random.normal(
            keys[4], (1, num_patches + 2, E), jnp.float32) * 0.02,
        "norm_g": jnp.ones((E,), jnp.float32),
        "norm_b": jnp.zeros((E,), jnp.float32),
        "head_w": dense(keys[5], E, (E, num_classes)),
        "head_b": jax.random.normal(keys[6], (num_classes,), jnp.float32) * 0.02,
        "head_dist_w": dense(keys[7], E, (E, num_classes)),
        "head_dist_b": jax.random.normal(keys[8], (num_classes,), jnp.float32) * 0.02,
        "blocks": [],
    }
    for d in range(depth):
        kb = jax.random.split(keys[10 + d], 8)
        params["blocks"].append({
            "ln1_g": jnp.ones((E,), jnp.float32)
                     + jax.random.normal(kb[7], (E,), jnp.float32) * 0.02,
            "ln1_b": jnp.zeros((E,), jnp.float32),
            "qkv_w": dense(kb[0], E, (E, 3 * E)),          # qkv_bias=False
            "proj_w": dense(kb[1], E, (E, E)),
            "proj_b": jax.random.normal(kb[2], (E,), jnp.float32) * 0.02,
            "ln2_g": jnp.ones((E,), jnp.float32),
            "ln2_b": jnp.zeros((E,), jnp.float32),
            "fc1_w": dense(kb[3], E, (E, hidden)),
            "fc1_b": jax.random.normal(kb[4], (hidden,), jnp.float32) * 0.02,
            "fc2_w": dense(kb[5], hidden, (hidden, E)),
            "fc2_b": jax.random.normal(kb[6], (E,), jnp.float32) * 0.02,
        })
    return params


# ----------------------------------------------------------------------------
# Pure-JAX f32 reference (mirrors the PyTorch forward)
# ----------------------------------------------------------------------------
def reference_forward(image, params, cfg):
    E, H, P = cfg["embed_dim"], cfg["num_heads"], cfg["patch_size"]
    D = E // H
    B, C, Hi, Wi = image.shape
    Hp, Wp = Hi // P, Wi // P

    def ln(x, g, b, eps=1e-5):
        mu = jnp.mean(x, axis=-1, keepdims=True)
        var = jnp.mean((x - mu) ** 2, axis=-1, keepdims=True)
        return (x - mu) * jax.lax.rsqrt(var + eps) * g + b

    x = image.reshape(B, C, Hp, P, Wp, P).transpose(0, 2, 4, 1, 3, 5)
    x = x.reshape(B, Hp * Wp, C * P * P) @ params["patch_w"] + params["patch_b"]
    cls = jnp.broadcast_to(params["cls_token"], (B, 1, E))
    dist = jnp.broadcast_to(params["dist_token"], (B, 1, E))
    x = jnp.concatenate([cls, dist, x], axis=1) + params["pos_embed"]
    for p in params["blocks"]:
        h = ln(x, p["ln1_g"], p["ln1_b"])
        qkv = h @ p["qkv_w"]
        _, N, _ = qkv.shape
        qkv = qkv.reshape(B, N, 3, H, D).transpose(2, 0, 3, 1, 4)
        q, k, v = qkv[0], qkv[1], qkv[2]
        s = jnp.einsum("bhnd,bhmd->bhnm", q, k) * (float(D) ** -0.5)
        a = jax.nn.softmax(s, axis=-1)
        o = jnp.einsum("bhnm,bhmd->bhnd", a, v).transpose(0, 2, 1, 3)
        x = x + (o.reshape(B, N, E) @ p["proj_w"] + p["proj_b"])
        h = ln(x, p["ln2_g"], p["ln2_b"])
        h = jax.nn.gelu(h @ p["fc1_w"] + p["fc1_b"], approximate=True)
        x = x + (h @ p["fc2_w"] + p["fc2_b"])
    x = ln(x, params["norm_g"], params["norm_b"])
    logits = x[:, 0] @ params["head_w"] + params["head_b"]
    logits_dist = x[:, 1] @ params["head_dist_w"] + params["head_dist_b"]
    return (logits + logits_dist) / 2.0


if __name__ == "__main__":
    cfg = dict(img_size=16, patch_size=8, in_chans=3, embed_dim=32,
               depth=2, num_heads=4, mlp_ratio=4.0, num_classes=8)
    num_patches = (cfg["img_size"] // cfg["patch_size"]) ** 2

    key = jax.random.PRNGKey(0)
    kx, kp = jax.random.split(key)
    image = jax.random.normal(
        kx, (2, cfg["in_chans"], cfg["img_size"], cfg["img_size"]), jnp.float32)
    params = init_params(
        kp, in_chans=cfg["in_chans"], patch_size=cfg["patch_size"],
        num_patches=num_patches, embed_dim=cfg["embed_dim"], depth=cfg["depth"],
        num_heads=cfg["num_heads"], mlp_ratio=cfg["mlp_ratio"],
        num_classes=cfg["num_classes"])

    fwd = jax.jit(lambda img: distilled_vit_forward(img, params, cfg))
    out = jax.block_until_ready(fwd(image))

    ref = reference_forward(image, params, cfg)
    assert out.shape == (2, cfg["num_classes"])
    rel = float(jnp.linalg.norm(out - ref) / (jnp.linalg.norm(ref) + 1e-12))
    assert rel < 5e-2, f"mismatch vs JAX reference: rel_err={rel}"

    print("KERNEL_OK")
</pallas_src>

<mosaic_0001>
module attributes {stable_mosaic.version = 11 : i64} {
  func.func @_linear_kernel(%arg0: i32, %arg1: i32, %arg2: i32, %arg3: memref<8x192xbf16, #tpu.memory_space<vmem>>, %arg4: memref<192x32xbf16, #tpu.memory_space<vmem>>, %arg5: memref<1x32xf32, #tpu.memory_space<vmem>>, %arg6: memref<8x32xf32, #tpu.memory_space<vmem>>, %arg7: memref<8x32xf32, #tpu.memory_space<vmem>>) attributes {dimension_semantics = [#tpu.dimension_semantics<parallel>, #tpu.dimension_semantics<parallel>, #tpu.dimension_semantics<arbitrary>], iteration_bounds = array<i64: 1, 1, 1>, scalar_prefetch = 0 : i64, scratch_operands = 1 : i64, tpu.core_type = #tpu.core_type<tc>, window_params = [{transform_indices = @transform_0, window_bounds = array<i64: 8, 192>}, {transform_indices = @transform_1, window_bounds = array<i64: 192, 32>}, {transform_indices = @transform_2, window_bounds = array<i64: 1, 32>}, {transform_indices = @transform_3, window_bounds = array<i64: 8, 32>}]} {
    %c0_i32 = arith.constant 0 : i32
    %0 = arith.cmpi eq, %arg2, %c0_i32 : i32
    %1 = arith.extui %0 : i1 to i32
    %c0_i32_0 = arith.constant 0 : i32
    %2 = arith.cmpi ne, %1, %c0_i32_0 : i32
    scf.if %2 {
      %cst_10 = arith.constant 0.000000e+00 : f32
      %12 = vector.broadcast %cst_10 : f32 to vector<8x32xf32>
      %c0_11 = arith.constant 0 : index
      %c0_12 = arith.constant 0 : index
      %13 = vector.load %arg7[%c0_11, %c0_12] : memref<8x32xf32, #tpu.memory_space<vmem>>, vector<8x32xf32>
      tpu.vector_store %arg7[%c0_11, %c0_12], %12 {strides = array<i32>} : memref<8x32xf32, #tpu.memory_space<vmem>>, vector<8x32xf32>,
    } else {
    }
    %c0 = arith.constant 0 : index
    %c0_1 = arith.constant 0 : index
    %3 = vector.load %arg7[%c0, %c0_1] : memref<8x32xf32, #tpu.memory_space<vmem>>, vector<8x32xf32>
    %c0_2 = arith.constant 0 : index
    %c0_3 = arith.constant 0 : index
    %4 = vector.load %arg3[%c0_2, %c0_3] : memref<8x192xbf16, #tpu.memory_space<vmem>>, vector<8x192xbf16>
    %c0_4 = arith.constant 0 : index
    %c0_5 = arith.constant 0 : index
    %5 = vector.load %arg4[%c0_4, %c0_5] : memref<192x32xbf16, #tpu.memory_space<vmem>>, vector<192x32xbf16>
    %cst = arith.constant dense<0.000000e+00> : vector<8x32xf32>
    %6 = tpu.matmul %4, %5, %cst {dimension_numbers = #tpu.dot_dimension_numbers<[1], [0], [0], [1], [0, 0, 1, 1], [], []>} : vector<8x192xbf16>, vector<192x32xbf16>, vector<8x32xf32> -> vector<8x32xf32>
    %7 = arith.addf %3, %6 : vector<8x32xf32>
    %c0_6 = arith.constant 0 : index
    %c0_7 = arith.constant 0 : index
    %8 = vector.load %arg7[%c0_6, %c0_7] : memref<8x32xf32, #tpu.memory_space<vmem>>, vector<8x32xf32>
    tpu.vector_store %arg7[%c0_6, %c0_7], %7 {strides = array<i32>} : memref<8x32xf32, #tpu.memory_space<vmem>>, vector<8x32xf32>,
    %c0_i32_8 = arith.constant 0 : i32
    %9 = arith.cmpi eq, %arg2, %c0_i32_8 : i32
    %10 = arith.extui %9 : i1 to i32
    %c0_i32_9 = arith.constant 0 : i32
    %11 = arith.cmpi ne, %10, %c0_i32_9 : i32
    scf.if %11 {
      %c0_10 = arith.constant 0 : index
      %c0_11 = arith.constant 0 : index
      %12 = vector.load %arg7[%c0_10, %c0_11] : memref<8x32xf32, #tpu.memory_space<vmem>>, vector<8x32xf32>
      %c0_12 = arith.constant 0 : index
      %c0_13 = arith.constant 0 : index
      %13 = vector.load %arg5[%c0_12, %c0_13] : memref<1x32xf32, #tpu.memory_space<vmem>>, vector<1x32xf32>
      %14 = vector.broadcast %13 : vector<1x32xf32> to vector<8x32xf32>
      %15 = arith.addf %12, %14 : vector<8x32xf32>
      %c0_14 = arith.constant 0 : index
      %c0_15 = arith.constant 0 : index
      %16 = vector.load %arg6[%c0_14, %c0_15] : memref<8x32xf32, #tpu.memory_space<vmem>>, vector<8x32xf32>
      tpu.vector_store %arg6[%c0_14, %c0_15], %15 {strides = array<i32>} : memref<8x32xf32, #tpu.memory_space<vmem>>, vector<8x32xf32>,
    } else {
    }
    return
  }
  func.func @transform_0(%arg0: i32, %arg1: i32, %arg2: i32) -> (i32, i32) {
    %c0_i32 = arith.constant 0 : i32
    return %arg0, %arg2 : i32, i32
  }
  func.func @transform_1(%arg0: i32, %arg1: i32, %arg2: i32) -> (i32, i32) {
    %c0_i32 = arith.constant 0 : i32
    return %arg2, %arg1 : i32, i32
  }
  func.func @transform_2(%arg0: i32, %arg1: i32, %arg2: i32) -> (i32, i32) {
    %c0_i32 = arith.constant 0 : i32
    %c0_i32_0 = arith.constant 0 : i32
    return %c0_i32, %arg1 : i32, i32
  }
  func.func @transform_3(%arg0: i32, %arg1: i32, %arg2: i32) -> (i32, i32) {
    %c0_i32 = arith.constant 0 : i32
    return %arg0, %arg1 : i32, i32
  }
}

module attributes {stable_mosaic.version = 11 : i64} {
  func.func @_layernorm_kernel(%arg0: i32, %arg1: memref<16x32xf32, #tpu.memory_space<vmem>>, %arg2: memref<1x32xf32, #tpu.memory_space<vmem>>, %arg3: memref<1x32xf32, #tpu.memory_space<vmem>>, %arg4: memref<16x32xf32, #tpu.memory_space<vmem>>) attributes {dimension_semantics = [#tpu.dimension_semantics<parallel>], iteration_bounds = array<i64: 1>, scalar_prefetch = 0 : i64, scratch_operands = 0 : i64, tpu.core_type = #tpu.core_type<tc>, window_params = [{transform_indices = @transform_0, window_bounds = array<i64: 16, 32>}, {pipeline_mode = #tpu.pipeline_mode<synchronous>, transform_indices = @transform_1, window_bounds = array<i64: 1, 32>}, {pipeline_mode = #tpu.pipeline_mode<synchronous>, transform_indices = @transform_2, window_bounds = array<i64: 1, 32>}, {transform_indices = @transform_3, window_bounds = array<i64: 16, 32>}]} {
    %c0 = arith.constant 0 : index
    %c0_0 = arith.constant 0 : index
    %0 = vector.load %arg1[%c0, %c0_0] : memref<16x32xf32, #tpu.memory_space<vmem>>, vector<16x32xf32>
    %cst = arith.constant dense<0.000000e+00> : vector<16xf32>
    %1 = vector.multi_reduction <add>, %0, %cst [1] : vector<16x32xf32> to vector<16xf32>
    %2 = vector.shape_cast %1 : vector<16xf32> to vector<16x1xf32>
    %cst_1 = arith.constant 3.200000e+01 : f32
    %3 = vector.broadcast %cst_1 : f32 to vector<16x1xf32>
    %4 = arith.divf %2, %3 : vector<16x1xf32>
    %5 = vector.broadcast %4 : vector<16x1xf32> to vector<16x32xf32>
    %6 = arith.subf %0, %5 : vector<16x32xf32>
    %7 = arith.mulf %6, %6 : vector<16x32xf32>
    %cst_2 = arith.constant dense<0.000000e+00> : vector<16xf32>
    %8 = vector.multi_reduction <add>, %7, %cst_2 [1] : vector<16x32xf32> to vector<16xf32>
    %9 = vector.shape_cast %8 : vector<16xf32> to vector<16x1xf32>
    %cst_3 = arith.constant 3.200000e+01 : f32
    %10 = vector.broadcast %cst_3 : f32 to vector<16x1xf32>
    %11 = arith.divf %9, %10 : vector<16x1xf32>
    %cst_4 = arith.constant 9.99999974E-6 : f32
    %12 = vector.broadcast %cst_4 : f32 to vector<16x1xf32>
    %13 = arith.addf %11, %12 : vector<16x1xf32>
    %14 = math.rsqrt %13 : vector<16x1xf32>
    %15 = vector.broadcast %14 : vector<16x1xf32> to vector<16x32xf32>
    %16 = arith.mulf %6, %15 : vector<16x32xf32>
    %c0_5 = arith.constant 0 : index
    %c0_6 = arith.constant 0 : index
    %17 = vector.load %arg2[%c0_5, %c0_6] : memref<1x32xf32, #tpu.memory_space<vmem>>, vector<1x32xf32>
    %18 = vector.broadcast %17 : vector<1x32xf32> to vector<16x32xf32>
    %19 = arith.mulf %16, %18 : vector<16x32xf32>
    %c0_7 = arith.constant 0 : index
    %c0_8 = arith.constant 0 : index
    %20 = vector.load %arg3[%c0_7, %c0_8] : memref<1x32xf32, #tpu.memory_space<vmem>>, vector<1x32xf32>
    %21 = vector.broadcast %20 : vector<1x32xf32> to vector<16x32xf32>
    %22 = arith.addf %19, %21 : vector<16x32xf32>
    %c0_9 = arith.constant 0 : index
    %c0_10 = arith.constant 0 : index
    %23 = vector.load %arg4[%c0_9, %c0_10] : memref<16x32xf32, #tpu.memory_space<vmem>>, vector<16x32xf32>
    tpu.vector_store %arg4[%c0_9, %c0_10], %22 {strides = array<i32>} : memref<16x32xf32, #tpu.memory_space<vmem>>, vector<16x32xf32>,
    return
  }
  func.func @transform_0(%arg0: i32) -> (i32, i32) {
    %c0_i32 = arith.constant 0 : i32
    %c0_i32_0 = arith.constant 0 : i32
    return %arg0, %c0_i32 : i32, i32
  }
  func.func @transform_1(%arg0: i32) -> (i32, i32) {
    %c0_i32 = arith.constant 0 : i32
    %c0_i32_0 = arith.constant 0 : i32
    %c0_i32_1 = arith.constant 0 : i32
    return %c0_i32, %c0_i32_0 : i32, i32
  }
  func.func @transform_2(%arg0: i32) -> (i32, i32) {
    %c0_i32 = arith.constant 0 : i32
    %c0_i32_0 = arith.constant 0 : i32
    %c0_i32_1 = arith.constant 0 : i32
    return %c0_i32, %c0_i32_0 : i32, i32
  }
  func.func @transform_3(%arg0: i32) -> (i32, i32) {
    %c0_i32 = arith.constant 0 : i32
    %c0_i32_0 = arith.constant 0 : i32
    return %arg0, %c0_i32 : i32, i32
  }
}

module attributes {stable_mosaic.version = 11 : i64} {
  func.func @_linear_kernel(%arg0: i32, %arg1: i32, %arg2: i32, %arg3: memref<16x32xbf16, #tpu.memory_space<vmem>>, %arg4: memref<32x96xbf16, #tpu.memory_space<vmem>>, %arg5: memref<16x96xbf16, #tpu.memory_space<vmem>>, %arg6: memref<16x96xf32, #tpu.memory_space<vmem>>) attributes {dimension_semantics = [#tpu.dimension_semantics<parallel>, #tpu.dimension_semantics<parallel>, #tpu.dimension_semantics<arbitrary>], iteration_bounds = array<i64: 1, 1, 1>, scalar_prefetch = 0 : i64, scratch_operands = 1 : i64, tpu.core_type = #tpu.core_type<tc>, window_params = [{transform_indices = @transform_0, window_bounds = array<i64: 16, 32>}, {transform_indices = @transform_1, window_bounds = array<i64: 32, 96>}, {transform_indices = @transform_2, window_bounds = array<i64: 16, 96>}]} {
    %c0_i32 = arith.constant 0 : i32
    %0 = arith.cmpi eq, %arg2, %c0_i32 : i32
    %1 = arith.extui %0 : i1 to i32
    %c0_i32_0 = arith.constant 0 : i32
    %2 = arith.cmpi ne, %1, %c0_i32_0 : i32
    scf.if %2 {
      %cst_10 = arith.constant 0.000000e+00 : f32
      %12 = vector.broadcast %cst_10 : f32 to vector<16x96xf32>
      %c0_11 = arith.constant 0 : index
      %c0_12 = arith.constant 0 : index
      %13 = vector.load %arg6[%c0_11, %c0_12] : memref<16x96xf32, #tpu.memory_space<vmem>>, vector<16x96xf32>
      tpu.vector_store %arg6[%c0_11, %c0_12], %12 {strides = array<i32>} : memref<16x96xf32, #tpu.memory_space<vmem>>, vector<16x96xf32>,
    } else {
    }
    %c0 = arith.constant 0 : index
    %c0_1 = arith.constant 0 : index
    %3 = vector.load %arg6[%c0, %c0_1] : memref<16x96xf32, #tpu.memory_space<vmem>>, vector<16x96xf32>
    %c0_2 = arith.constant 0 : index
    %c0_3 = arith.constant 0 : index
    %4 = vector.load %arg3[%c0_2, %c0_3] : memref<16x32xbf16, #tpu.memory_space<vmem>>, vector<16x32xbf16>
    %c0_4 = arith.constant 0 : index
    %c0_5 = arith.constant 0 : index
    %5 = vector.load %arg4[%c0_4, %c0_5] : memref<32x96xbf16, #tpu.memory_space<vmem>>, vector<32x96xbf16>
    %cst = arith.constant dense<0.000000e+00> : vector<16x96xf32>
    %6 = tpu.matmul %4, %5, %cst {dimension_numbers = #tpu.dot_dimension_numbers<[1], [0], [0], [1], [0, 0, 1, 1], [], []>} : vector<16x32xbf16>, vector<32x96xbf16>, vector<16x96xf32> -> vector<16x96xf32>
    %7 = arith.addf %3, %6 : vector<16x96xf32>
    %c0_6 = arith.constant 0 : index
    %c0_7 = arith.constant 0 : index
    %8 = vector.load %arg6[%c0_6, %c0_7] : memref<16x96xf32, #tpu.memory_space<vmem>>, vector<16x96xf32>
    tpu.vector_store %arg6[%c0_6, %c0_7], %7 {strides = array<i32>} : memref<16x96xf32, #tpu.memory_space<vmem>>, vector<16x96xf32>,
    %c0_i32_8 = arith.constant 0 : i32
    %9 = arith.cmpi eq, %arg2, %c0_i32_8 : i32
    %10 = arith.extui %9 : i1 to i32
    %c0_i32_9 = arith.constant 0 : i32
    %11 = arith.cmpi ne, %10, %c0_i32_9 : i32
    scf.if %11 {
      %c0_10 = arith.constant 0 : index
      %c0_11 = arith.constant 0 : index
      %12 = vector.load %arg6[%c0_10, %c0_11] : memref<16x96xf32, #tpu.memory_space<vmem>>, vector<16x96xf32>
      %13 = arith.truncf %12 : vector<16x96xf32> to vector<16x96xbf16>
      %c0_12 = arith.constant 0 : index
      %c0_13 = arith.constant 0 : index
      %14 = vector.load %arg5[%c0_12, %c0_13] : memref<16x96xbf16, #tpu.memory_space<vmem>>, vector<16x96xbf16>
      tpu.vector_store %arg5[%c0_12, %c0_13], %13 {strides = array<i32>} : memref<16x96xbf16, #tpu.memory_space<vmem>>, vector<16x96xbf16>,
    } else {
    }
    return
  }
  func.func @transform_0(%arg0: i32, %arg1: i32, %arg2: i32) -> (i32, i32) {
    %c0_i32 = arith.constant 0 : i32
    return %arg0, %arg2 : i32, i32
  }
  func.func @transform_1(%arg0: i32, %arg1: i32, %arg2: i32) -> (i32, i32) {
    %c0_i32 = arith.constant 0 : i32
    return %arg2, %arg1 : i32, i32
  }
  func.func @transform_2(%arg0: i32, %arg1: i32, %arg2: i32) -> (i32, i32) {
    %c0_i32 = arith.constant 0 : i32
    return %arg0, %arg1 : i32, i32
  }
}

module attributes {stable_mosaic.version = 11 : i64} {
  func.func @_mha_kernel(%arg0: i32, %arg1: memref<1x6x96xbf16, #tpu.memory_space<vmem>>, %arg2: memref<1x6x32xf32, #tpu.memory_space<vmem>>) attributes {dimension_semantics = [#tpu.dimension_semantics<parallel>], iteration_bounds = array<i64: 2>, scalar_prefetch = 0 : i64, scratch_operands = 0 : i64, tpu.core_type = #tpu.core_type<tc>, window_params = [{transform_indices = @transform_0, window_bounds = array<i64: 1, 6, 96>}, {transform_indices = @transform_1, window_bounds = array<i64: 1, 6, 32>}]} {
    %c0 = arith.constant 0 : index
    %c0_0 = arith.constant 0 : index
    %c0_1 = arith.constant 0 : index
    %0 = vector.load %arg1[%c0, %c0_0, %c0_1] : memref<1x6x96xbf16, #tpu.memory_space<vmem>>, vector<1x6x96xbf16>
    %1 = vector.shape_cast %0 : vector<1x6x96xbf16> to vector<6x96xbf16>
    %2 = vector.extract_strided_slice %1 {offsets = [0, 0], sizes = [6, 8], strides = [1, 1]} : vector<6x96xbf16> to vector<6x8xbf16>
    %cst = arith.constant 3.535160e-01 : bf16
    %3 = vector.broadcast %cst : bf16 to vector<6x8xbf16>
    %4 = arith.mulf %2, %3 : vector<6x8xbf16>
    %5 = vector.extract_strided_slice %1 {offsets = [0, 32], sizes = [6, 8], strides = [1, 1]} : vector<6x96xbf16> to vector<6x8xbf16>
    %6 = vector.extract_strided_slice %1 {offsets = [0, 64], sizes = [6, 8], strides = [1, 1]} : vector<6x96xbf16> to vector<6x8xbf16>
    %cst_2 = arith.constant dense<0.000000e+00> : vector<6x6xf32>
    %7 = tpu.matmul %4, %5, %cst_2 {dimension_numbers = #tpu.dot_dimension_numbers<[1], [1], [0], [0], [0, 0, 1, 0], [], []>} : vector<6x8xbf16>, vector<6x8xbf16>, vector<6x6xf32> -> vector<6x6xf32>
    %cst_3 = arith.constant dense<0xFF800000> : vector<6xf32>
    %8 = vector.multi_reduction <maximumf>, %7, %cst_3 [1] : vector<6x6xf32> to vector<6xf32>
    %9 = vector.shape_cast %8 : vector<6xf32> to vector<6x1xf32>
    %10 = vector.broadcast %9 : vector<6x1xf32> to vector<6x6xf32>
    %11 = arith.subf %7, %10 : vector<6x6xf32>
    %12 = math.exp %11 : vector<6x6xf32>
    %cst_4 = arith.constant dense<0.000000e+00> : vector<6xf32>
    %13 = vector.multi_reduction <add>, %12, %cst_4 [1] : vector<6x6xf32> to vector<6xf32>
    %14 = vector.shape_cast %13 : vector<6xf32> to vector<6x1xf32>
    %15 = tpu.reciprocal %14 {approx = true} : vector<6x1xf32> -> vector<6x1xf32>
    %16 = vector.broadcast %15 : vector<6x1xf32> to vector<6x6xf32>
    %17 = arith.mulf %12, %16 : vector<6x6xf32>
    %18 = arith.truncf %17 : vector<6x6xf32> to vector<6x6xbf16>
    %cst_5 = arith.constant dense<0.000000e+00> : vector<6x8xf32>
    %19 = tpu.matmul %18, %6, %cst_5 {dimension_numbers = #tpu.dot_dimension_numbers<[1], [0], [0], [1], [0, 0, 1, 1], [], []>} : vector<6x6xbf16>, vector<6x8xbf16>, vector<6x8xf32> -> vector<6x8xf32>
    %c0_6 = arith.constant 0 : index
    %c0_7 = arith.constant 0 : index
    %c0_8 = arith.constant 0 : index
    %20 = vector.load %arg2[%c0_6, %c0_7, %c0_8] : memref<1x6x32xf32, #tpu.memory_space<vmem>>, vector<1x6x8xf32>
    %21 = vector.shape_cast %20 : vector<1x6x8xf32> to vector<6x8xf32>
    %22 = vector.shape_cast %19 : vector<6x8xf32> to vector<1x6x8xf32>
    tpu.vector_store %arg2[%c0_6, %c0_7, %c0_8], %22 {strides = array<i32>} : memref<1x6x32xf32, #tpu.memory_space<vmem>>, vector<1x6x8xf32>,
    %23 = vector.extract_strided_slice %1 {offsets = [0, 8], sizes = [6, 8], strides = [1, 1]} : vector<6x96xbf16> to vector<6x8xbf16>
    %cst_9 = arith.constant 3.535160e-01 : bf16
    %24 = vector.broadcast %cst_9 : bf16 to vector<6x8xbf16>
    %25 = arith.mulf %23, %24 : vector<6x8xbf16>
    %26 = vector.extract_strided_slice %1 {offsets = [0, 40], sizes = [6, 8], strides = [1, 1]} : vector<6x96xbf16> to vector<6x8xbf16>
    %27 = vector.extract_strided_slice %1 {offsets = [0, 72], sizes = [6, 8], strides = [1, 1]} : vector<6x96xbf16> to vector<6x8xbf16>
    %cst_10 = arith.constant dense<0.000000e+00> : vector<6x6xf32>
    %28 = tpu.matmul %25, %26, %cst_10 {dimension_numbers = #tpu.dot_dimension_numbers<[1], [1], [0], [0], [0, 0, 1, 0], [], []>} : vector<6x8xbf16>, vector<6x8xbf16>, vector<6x6xf32> -> vector<6x6xf32>
    %cst_11 = arith.constant dense<0xFF800000> : vector<6xf32>
    %29 = vector.multi_reduction <maximumf>, %28, %cst_11 [1] : vector<6x6xf32> to vector<6xf32>
    %30 = vector.shape_cast %29 : vector<6xf32> to vector<6x1xf32>
    %31 = vector.broadcast %30 : vector<6x1xf32> to vector<6x6xf32>
    %32 = arith.subf %28, %31 : vector<6x6xf32>
    %33 = math.exp %32 : vector<6x6xf32>
    %cst_12 = arith.constant dense<0.000000e+00> : vector<6xf32>
    %34 = vector.multi_reduction <add>, %33, %cst_12 [1] : vector<6x6xf32> to vector<6xf32>
    %35 = vector.shape_cast %34 : vector<6xf32> to vector<6x1xf32>
    %36 = tpu.reciprocal %35 {approx = true} : vector<6x1xf32> -> vector<6x1xf32>
    %37 = vector.broadcast %36 : vector<6x1xf32> to vector<6x6xf32>
    %38 = arith.mulf %33, %37 : vector<6x6xf32>
    %39 = arith.truncf %38 : vector<6x6xf32> to vector<6x6xbf16>
    %cst_13 = arith.constant dense<0.000000e+00> : vector<6x8xf32>
    %40 = tpu.matmul %39, %27, %cst_13 {dimension_numbers = #tpu.dot_dimension_numbers<[1], [0], [0], [1], [0, 0, 1, 1], [], []>} : vector<6x6xbf16>, vector<6x8xbf16>, vector<6x8xf32> -> vector<6x8xf32>
    %c0_14 = arith.constant 0 : index
    %c0_15 = arith.constant 0 : index
    %c8 = arith.constant 8 : index
    %41 = vector.load %arg2[%c0_14, %c0_15, %c8] : memref<1x6x32xf32, #tpu.memory_space<vmem>>, vector<1x6x8xf32>
    %42 = vector.shape_cast %41 : vector<1x6x8xf32> to vector<6x8xf32>
    %43 = vector.shape_cast %40 : vector<6x8xf32> to vector<1x6x8xf32>
    tpu.vector_store %arg2[%c0_14, %c0_15, %c8], %43 {strides = array<i32>} : memref<1x6x32xf32, #tpu.memory_space<vmem>>, vector<1x6x8xf32>,
    %44 = vector.extract_strided_slice %1 {offsets = [0, 16], sizes = [6, 8], strides = [1, 1]} : vector<6x96xbf16> to vector<6x8xbf16>
    %cst_16 = arith.constant 3.535160e-01 : bf16
    %45 = vector.broadcast %cst_16 : bf16 to vector<6x8xbf16>
    %46 = arith.mulf %44, %45 : vector<6x8xbf16>
    %47 = vector.extract_strided_slice %1 {offsets = [0, 48], sizes = [6, 8], strides = [1, 1]} : vector<6x96xbf16> to vector<6x8xbf16>
    %48 = vector.extract_strided_slice %1 {offsets = [0, 80], sizes = [6, 8], strides = [1, 1]} : vector<6x96xbf16> to vector<6x8xbf16>
    %cst_17 = arith.constant dense<0.000000e+00> : vector<6x6xf32>
    %49 = tpu.matmul %46, %47, %cst_17 {dimension_numbers = #tpu.dot_dimension_numbers<[1], [1], [0], [0], [0, 0, 1, 0], [], []>} : vector<6x8xbf16>, vector<6x8xbf16>, vector<6x6xf32> -> vector<6x6xf32>
    %cst_18 = arith.constant dense<0xFF800000> : vector<6xf32>
    %50 = vector.multi_reduction <maximumf>, %49, %cst_18 [1] : vector<6x6xf32> to vector<6xf32>
    %51 = vector.shape_cast %50 : vector<6xf32> to vector<6x1xf32>
    %52 = vector.broadcast %51 : vector<6x1xf32> to vector<6x6xf32>
    %53 = arith.subf %49, %52 : vector<6x6xf32>
    %54 = math.exp %53 : vector<6x6xf32>
    %cst_19 = arith.constant dense<0.000000e+00> : vector<6xf32>
    %55 = vector.multi_reduction <add>, %54, %cst_19 [1] : vector<6x6xf32> to vector<6xf32>
    %56 = vector.shape_cast %55 : vector<6xf32> to vector<6x1xf32>
    %57 = tpu.reciprocal %56 {approx = true} : vector<6x1xf32> -> vector<6x1xf32>
    %58 = vector.broadcast %57 : vector<6x1xf32> to vector<6x6xf32>
    %59 = arith.mulf %54, %58 : vector<6x6xf32>
    %60 = arith.truncf %59 : vector<6x6xf32> to vector<6x6xbf16>
    %cst_20 = arith.constant dense<0.000000e+00> : vector<6x8xf32>
    %61 = tpu.matmul %60, %48, %cst_20 {dimension_numbers = #tpu.dot_dimension_numbers<[1], [0], [0], [1], [0, 0, 1, 1], [], []>} : vector<6x6xbf16>, vector<6x8xbf16>, vector<6x8xf32> -> vector<6x8xf32>
    %c0_21 = arith.constant 0 : index
    %c0_22 = arith.constant 0 : index
    %c16 = arith.constant 16 : index
    %62 = vector.load %arg2[%c0_21, %c0_22, %c16] : memref<1x6x32xf32, #tpu.memory_space<vmem>>, vector<1x6x8xf32>
    %63 = vector.shape_cast %62 : vector<1x6x8xf32> to vector<6x8xf32>
    %64 = vector.shape_cast %61 : vector<6x8xf32> to vector<1x6x8xf32>
    tpu.vector_store %arg2[%c0_21, %c0_22, %c16], %64 {strides = array<i32>} : memref<1x6x32xf32, #tpu.memory_space<vmem>>, vector<1x6x8xf32>,
    %65 = vector.extract_strided_slice %1 {offsets = [0, 24], sizes = [6, 8], strides = [1, 1]} : vector<6x96xbf16> to vector<6x8xbf16>
    %cst_23 = arith.constant 3.535160e-01 : bf16
    %66 = vector.broadcast %cst_23 : bf16 to vector<6x8xbf16>
    %67 = arith.mulf %65, %66 : vector<6x8xbf16>
    %68 = vector.extract_strided_slice %1 {offsets = [0, 56], sizes = [6, 8], strides = [1, 1]} : vector<6x96xbf16> to vector<6x8xbf16>
    %69 = vector.extract_strided_slice %1 {offsets = [0, 88], sizes = [6, 8], strides = [1, 1]} : vector<6x96xbf16> to vector<6x8xbf16>
    %cst_24 = arith.constant dense<0.000000e+00> : vector<6x6xf32>
    %70 = tpu.matmul %67, %68, %cst_24 {dimension_numbers = #tpu.dot_dimension_numbers<[1], [1], [0], [0], [0, 0, 1, 0], [], []>} : vector<6x8xbf16>, vector<6x8xbf16>, vector<6x6xf32> -> vector<6x6xf32>
    %cst_25 = arith.constant dense<0xFF800000> : vector<6xf32>
    %71 = vector.multi_reduction <maximumf>, %70, %cst_25 [1] : vector<6x6xf32> to vector<6xf32>
    %72 = vector.shape_cast %71 : vector<6xf32> to vector<6x1xf32>
    %73 = vector.broadcast %72 : vector<6x1xf32> to vector<6x6xf32>
    %74 = arith.subf %70, %73 : vector<6x6xf32>
    %75 = math.exp %74 : vector<6x6xf32>
    %cst_26 = arith.constant dense<0.000000e+00> : vector<6xf32>
    %76 = vector.multi_reduction <add>, %75, %cst_26 [1] : vector<6x6xf32> to vector<6xf32>
    %77 = vector.shape_cast %76 : vector<6xf32> to vector<6x1xf32>
    %78 = tpu.reciprocal %77 {approx = true} : vector<6x1xf32> -> vector<6x1xf32>
    %79 = vector.broadcast %78 : vector<6x1xf32> to vector<6x6xf32>
    %80 = arith.mulf %75, %79 : vector<6x6xf32>
    %81 = arith.truncf %80 : vector<6x6xf32> to vector<6x6xbf16>
    %cst_27 = arith.constant dense<0.000000e+00> : vector<6x8xf32>
    %82 = tpu.matmul %81, %69, %cst_27 {dimension_numbers = #tpu.dot_dimension_numbers<[1], [0], [0], [1], [0, 0, 1, 1], [], []>} : vector<6x6xbf16>, vector<6x8xbf16>, vector<6x8xf32> -> vector<6x8xf32>
    %c0_28 = arith.constant 0 : index
    %c0_29 = arith.constant 0 : index
    %c24 = arith.constant 24 : index
    %83 = vector.load %arg2[%c0_28, %c0_29, %c24] : memref<1x6x32xf32, #tpu.memory_space<vmem>>, vector<1x6x8xf32>
    %84 = vector.shape_cast %83 : vector<1x6x8xf32> to vector<6x8xf32>
    %85 = vector.shape_cast %82 : vector<6x8xf32> to vector<1x6x8xf32>
    tpu.vector_store %arg2[%c0_28, %c0_29, %c24], %85 {strides = array<i32>} : memref<1x6x32xf32, #tpu.memory_space<vmem>>, vector<1x6x8xf32>,
    return
  }
  func.func @transform_0(%arg0: i32) -> (i32, i32, i32) {
    %c0_i32 = arith.constant 0 : i32
    %c0_i32_0 = arith.constant 0 : i32
    %c0_i32_1 = arith.constant 0 : i32
    return %arg0, %c0_i32, %c0_i32_0 : i32, i32, i32
  }
  func.func @transform_1(%arg0: i32) -> (i32, i32, i32) {
    %c0_i32 = arith.constant 0 : i32
    %c0_i32_0 = arith.constant 0 : i32
    %c0_i32_1 = arith.constant 0 : i32
    return %arg0, %c0_i32, %c0_i32_0 : i32, i32, i32
  }
}

module attributes {stable_mosaic.version = 11 : i64} {
  func.func @_linear_kernel(%arg0: i32, %arg1: i32, %arg2: i32, %arg3: memref<16x32xbf16, #tpu.memory_space<vmem>>, %arg4: memref<32x32xbf16, #tpu.memory_space<vmem>>, %arg5: memref<1x32xf32, #tpu.memory_space<vmem>>, %arg6: memref<16x32xf32, #tpu.memory_space<vmem>>, %arg7: memref<16x32xf32, #tpu.memory_space<vmem>>) attributes {dimension_semantics = [#tpu.dimension_semantics<parallel>, #tpu.dimension_semantics<parallel>, #tpu.dimension_semantics<arbitrary>], iteration_bounds = array<i64: 1, 1, 1>, scalar_prefetch = 0 : i64, scratch_operands = 1 : i64, tpu.core_type = #tpu.core_type<tc>, window_params = [{transform_indices = @transform_0, window_bounds = array<i64: 16, 32>}, {transform_indices = @transform_1, window_bounds = array<i64: 32, 32>}, {transform_indices = @transform_2, window_bounds = array<i64: 1, 32>}, {transform_indices = @transform_3, window_bounds = array<i64: 16, 32>}]} {
    %c0_i32 = arith.constant 0 : i32
    %0 = arith.cmpi eq, %arg2, %c0_i32 : i32
    %1 = arith.extui %0 : i1 to i32
    %c0_i32_0 = arith.constant 0 : i32
    %2 = arith.cmpi ne, %1, %c0_i32_0 : i32
    scf.if %2 {
      %cst_10 = arith.constant 0.000000e+00 : f32
      %12 = vector.broadcast %cst_10 : f32 to vector<16x32xf32>
      %c0_11 = arith.constant 0 : index
      %c0_12 = arith.constant 0 : index
      %13 = vector.load %arg7[%c0_11, %c0_12] : memref<16x32xf32, #tpu.memory_space<vmem>>, vector<16x32xf32>
      tpu.vector_store %arg7[%c0_11, %c0_12], %12 {strides = array<i32>} : memref<16x32xf32, #tpu.memory_space<vmem>>, vector<16x32xf32>,
    } else {
    }
    %c0 = arith.constant 0 : index
    %c0_1 = arith.constant 0 : index
    %3 = vector.load %arg7[%c0, %c0_1] : memref<16x32xf32, #tpu.memory_space<vmem>>, vector<16x32xf32>
    %c0_2 = arith.constant 0 : index
    %c0_3 = arith.constant 0 : index
    %4 = vector.load %arg3[%c0_2, %c0_3] : memref<16x32xbf16, #tpu.memory_space<vmem>>, vector<16x32xbf16>
    %c0_4 = arith.constant 0 : index
    %c0_5 = arith.constant 0 : index
    %5 = vector.load %arg4[%c0_4, %c0_5] : memref<32x32xbf16, #tpu.memory_space<vmem>>, vector<32x32xbf16>
    %cst = arith.constant dense<0.000000e+00> : vector<16x32xf32>
    %6 = tpu.matmul %4, %5, %cst {dimension_numbers = #tpu.dot_dimension_numbers<[1], [0], [0], [1], [0, 0, 1, 1], [], []>} : vector<16x32xbf16>, vector<32x32xbf16>, vector<16x32xf32> -> vector<16x32xf32>
    %7 = arith.addf %3, %6 : vector<16x32xf32>
    %c0_6 = arith.constant 0 : index
    %c0_7 = arith.constant 0 : index
    %8 = vector.load %arg7[%c0_6, %c0_7] : memref<16x32xf32, #tpu.memory_space<vmem>>, vector<16x32xf32>
    tpu.vector_store %arg7[%c0_6, %c0_7], %7 {strides = array<i32>} : memref<16x32xf32, #tpu.memory_space<vmem>>, vector<16x32xf32>,
    %c0_i32_8 = arith.constant 0 : i32
    %9 = arith.cmpi eq, %arg2, %c0_i32_8 : i32
    %10 = arith.extui %9 : i1 to i32
    %c0_i32_9 = arith.constant 0 : i32
    %11 = arith.cmpi ne, %10, %c0_i32_9 : i32
    scf.if %11 {
      %c0_10 = arith.constant 0 : index
      %c0_11 = arith.constant 0 : index
      %12 = vector.load %arg7[%c0_10, %c0_11] : memref<16x32xf32, #tpu.memory_space<vmem>>, vector<16x32xf32>
      %c0_12 = arith.constant 0 : index
      %c0_13 = arith.constant 0 : index
      %13 = vector.load %arg5[%c0_12, %c0_13] : memref<1x32xf32, #tpu.memory_space<vmem>>, vector<1x32xf32>
      %14 = vector.broadcast %13 : vector<1x32xf32> to vector<16x32xf32>
      %15 = arith.addf %12, %14 : vector<16x32xf32>
      %c0_14 = arith.constant 0 : index
      %c0_15 = arith.constant 0 : index
      %16 = vector.load %arg6[%c0_14, %c0_15] : memref<16x32xf32, #tpu.memory_space<vmem>>, vector<16x32xf32>
      tpu.vector_store %arg6[%c0_14, %c0_15], %15 {strides = array<i32>} : memref<16x32xf32, #tpu.memory_space<vmem>>, vector<16x32xf32>,
    } else {
    }
    return
  }
  func.func @transform_0(%arg0: i32, %arg1: i32, %arg2: i32) -> (i32, i32) {
    %c0_i32 = arith.constant 0 : i32
    return %arg0, %arg2 : i32, i32
  }
  func.func @transform_1(%arg0: i32, %arg1: i32, %arg2: i32) -> (i32, i32) {
    %c0_i32 = arith.constant 0 : i32
    return %arg2, %arg1 : i32, i32
  }
  func.func @transform_2(%arg0: i32, %arg1: i32, %arg2: i32) -> (i32, i32) {
    %c0_i32 = arith.constant 0 : i32
    %c0_i32_0 = arith.constant 0 : i32
    return %c0_i32, %arg1 : i32, i32
  }
  func.func @transform_3(%arg0: i32, %arg1: i32, %arg2: i32) -> (i32, i32) {
    %c0_i32 = arith.constant 0 : i32
    return %arg0, %arg1 : i32, i32
  }
}

module attributes {stable_mosaic.version = 11 : i64} {
  func.func @_linear_kernel(%arg0: i32, %arg1: i32, %arg2: i32, %arg3: memref<16x128xbf16, #tpu.memory_space<vmem>>, %arg4: memref<128x32xbf16, #tpu.memory_space<vmem>>, %arg5: memref<1x32xf32, #tpu.memory_space<vmem>>, %arg6: memref<16x32xf32, #tpu.memory_space<vmem>>, %arg7: memref<16x32xf32, #tpu.memory_space<vmem>>) attributes {dimension_semantics = [#tpu.dimension_semantics<parallel>, #tpu.dimension_semantics<parallel>, #tpu.dimension_semantics<arbitrary>], iteration_bounds = array<i64: 1, 1, 1>, scalar_prefetch = 0 : i64, scratch_operands = 1 : i64, tpu.core_type = #tpu.core_type<tc>, window_params = [{transform_indices = @transform_0, window_bounds = array<i64: 16, 128>}, {transform_indices = @transform_1, window_bounds = array<i64: 128, 32>}, {transform_indices = @transform_2, window_bounds = array<i64: 1, 32>}, {transform_indices = @transform_3, window_bounds = array<i64: 16, 32>}]} {
    %c0_i32 = arith.constant 0 : i32
    %0 = arith.cmpi eq, %arg2, %c0_i32 : i32
    %1 = arith.extui %0 : i1 to i32
    %c0_i32_0 = arith.constant 0 : i32
    %2 = arith.cmpi ne, %1, %c0_i32_0 : i32
    scf.if %2 {
      %cst_10 = arith.constant 0.000000e+00 : f32
      %12 = vector.broadcast %cst_10 : f32 to vector<16x32xf32>
      %c0_11 = arith.constant 0 : index
      %c0_12 = arith.constant 0 : index
      %13 = vector.load %arg7[%c0_11, %c0_12] : memref<16x32xf32, #tpu.memory_space<vmem>>, vector<16x32xf32>
      tpu.vector_store %arg7[%c0_11, %c0_12], %12 {strides = array<i32>} : memref<16x32xf32, #tpu.memory_space<vmem>>, vector<16x32xf32>,
    } else {
    }
    %c0 = arith.constant 0 : index
    %c0_1 = arith.constant 0 : index
    %3 = vector.load %arg7[%c0, %c0_1] : memref<16x32xf32, #tpu.memory_space<vmem>>, vector<16x32xf32>
    %c0_2 = arith.constant 0 : index
    %c0_3 = arith.constant 0 : index
    %4 = vector.load %arg3[%c0_2, %c0_3] : memref<16x128xbf16, #tpu.memory_space<vmem>>, vector<16x128xbf16>
    %c0_4 = arith.constant 0 : index
    %c0_5 = arith.constant 0 : index
    %5 = vector.load %arg4[%c0_4, %c0_5] : memref<128x32xbf16, #tpu.memory_space<vmem>>, vector<128x32xbf16>
    %cst = arith.constant dense<0.000000e+00> : vector<16x32xf32>
    %6 = tpu.matmul %4, %5, %cst {dimension_numbers = #tpu.dot_dimension_numbers<[1], [0], [0], [1], [0, 0, 1, 1], [], []>} : vector<16x128xbf16>, vector<128x32xbf16>, vector<16x32xf32> -> vector<16x32xf32>
    %7 = arith.addf %3, %6 : vector<16x32xf32>
    %c0_6 = arith.constant 0 : index
    %c0_7 = arith.constant 0 : index
    %8 = vector.load %arg7[%c0_6, %c0_7] : memref<16x32xf32, #tpu.memory_space<vmem>>, vector<16x32xf32>
    tpu.vector_store %arg7[%c0_6, %c0_7], %7 {strides = array<i32>} : memref<16x32xf32, #tpu.memory_space<vmem>>, vector<16x32xf32>,
    %c0_i32_8 = arith.constant 0 : i32
    %9 = arith.cmpi eq, %arg2, %c0_i32_8 : i32
    %10 = arith.extui %9 : i1 to i32
    %c0_i32_9 = arith.constant 0 : i32
    %11 = arith.cmpi ne, %10, %c0_i32_9 : i32
    scf.if %11 {
      %c0_10 = arith.constant 0 : index
      %c0_11 = arith.constant 0 : index
      %12 = vector.load %arg7[%c0_10, %c0_11] : memref<16x32xf32, #tpu.memory_space<vmem>>, vector<16x32xf32>
      %c0_12 = arith.constant 0 : index
      %c0_13 = arith.constant 0 : index
      %13 = vector.load %arg5[%c0_12, %c0_13] : memref<1x32xf32, #tpu.memory_space<vmem>>, vector<1x32xf32>
      %14 = vector.broadcast %13 : vector<1x32xf32> to vector<16x32xf32>
      %15 = arith.addf %12, %14 : vector<16x32xf32>
      %c0_14 = arith.constant 0 : index
      %c0_15 = arith.constant 0 : index
      %16 = vector.load %arg6[%c0_14, %c0_15] : memref<16x32xf32, #tpu.memory_space<vmem>>, vector<16x32xf32>
      tpu.vector_store %arg6[%c0_14, %c0_15], %15 {strides = array<i32>} : memref<16x32xf32, #tpu.memory_space<vmem>>, vector<16x32xf32>,
    } else {
    }
    return
  }
  func.func @transform_0(%arg0: i32, %arg1: i32, %arg2: i32) -> (i32, i32) {
    %c0_i32 = arith.constant 0 : i32
    return %arg0, %arg2 : i32, i32
  }
  func.func @transform_1(%arg0: i32, %arg1: i32, %arg2: i32) -> (i32, i32) {
    %c0_i32 = arith.constant 0 : i32
    return %arg2, %arg1 : i32, i32
  }
  func.func @transform_2(%arg0: i32, %arg1: i32, %arg2: i32) -> (i32, i32) {
    %c0_i32 = arith.constant 0 : i32
    %c0_i32_0 = arith.constant 0 : i32
    return %c0_i32, %arg1 : i32, i32
  }
  func.func @transform_3(%arg0: i32, %arg1: i32, %arg2: i32) -> (i32, i32) {
    %c0_i32 = arith.constant 0 : i32
    return %arg0, %arg1 : i32, i32
  }
}

module attributes {stable_mosaic.version = 11 : i64} {
  func.func @_linear_kernel(%arg0: i32, %arg1: i32, %arg2: i32, %arg3: memref<16x32xbf16, #tpu.memory_space<vmem>>, %arg4: memref<32x128xbf16, #tpu.memory_space<vmem>>, %arg5: memref<1x128xf32, #tpu.memory_space<vmem>>, %arg6: memref<16x128xf32, #tpu.memory_space<vmem>>, %arg7: memref<16x128xf32, #tpu.memory_space<vmem>>) attributes {dimension_semantics = [#tpu.dimension_semantics<parallel>, #tpu.dimension_semantics<parallel>, #tpu.dimension_semantics<arbitrary>], iteration_bounds = array<i64: 1, 1, 1>, scalar_prefetch = 0 : i64, scratch_operands = 1 : i64, tpu.core_type = #tpu.core_type<tc>, window_params = [{transform_indices = @transform_0, window_bounds = array<i64: 16, 32>}, {transform_indices = @transform_1, window_bounds = array<i64: 32, 128>}, {transform_indices = @transform_2, window_bounds = array<i64: 1, 128>}, {transform_indices = @transform_3, window_bounds = array<i64: 16, 128>}]} {
    %c0_i32 = arith.constant 0 : i32
    %0 = arith.cmpi eq, %arg2, %c0_i32 : i32
    %1 = arith.extui %0 : i1 to i32
    %c0_i32_0 = arith.constant 0 : i32
    %2 = arith.cmpi ne, %1, %c0_i32_0 : i32
    scf.if %2 {
      %cst_10 = arith.constant 0.000000e+00 : f32
      %12 = vector.broadcast %cst_10 : f32 to vector<16x128xf32>
      %c0_11 = arith.constant 0 : index
      %c0_12 = arith.constant 0 : index
      %13 = vector.load %arg7[%c0_11, %c0_12] : memref<16x128xf32, #tpu.memory_space<vmem>>, vector<16x128xf32>
      tpu.vector_store %arg7[%c0_11, %c0_12], %12 {strides = array<i32>} : memref<16x128xf32, #tpu.memory_space<vmem>>, vector<16x128xf32>,
    } else {
    }
    %c0 = arith.constant 0 : index
    %c0_1 = arith.constant 0 : index
    %3 = vector.load %arg7[%c0, %c0_1] : memref<16x128xf32, #tpu.memory_space<vmem>>, vector<16x128xf32>
    %c0_2 = arith.constant 0 : index
    %c0_3 = arith.constant 0 : index
    %4 = vector.load %arg3[%c0_2, %c0_3] : memref<16x32xbf16, #tpu.memory_space<vmem>>, vector<16x32xbf16>
    %c0_4 = arith.constant 0 : index
    %c0_5 = arith.constant 0 : index
    %5 = vector.load %arg4[%c0_4, %c0_5] : memref<32x128xbf16, #tpu.memory_space<vmem>>, vector<32x128xbf16>
    %cst = arith.constant dense<0.000000e+00> : vector<16x128xf32>
    %6 = tpu.matmul %4, %5, %cst {dimension_numbers = #tpu.dot_dimension_numbers<[1], [0], [0], [1], [0, 0, 1, 1], [], []>} : vector<16x32xbf16>, vector<32x128xbf16>, vector<16x128xf32> -> vector<16x128xf32>
    %7 = arith.addf %3, %6 : vector<16x128xf32>
    %c0_6 = arith.constant 0 : index
    %c0_7 = arith.constant 0 : index
    %8 = vector.load %arg7[%c0_6, %c0_7] : memref<16x128xf32, #tpu.memory_space<vmem>>, vector<16x128xf32>
    tpu.vector_store %arg7[%c0_6, %c0_7], %7 {strides = array<i32>} : memref<16x128xf32, #tpu.memory_space<vmem>>, vector<16x128xf32>,
    %c0_i32_8 = arith.constant 0 : i32
    %9 = arith.cmpi eq, %arg2, %c0_i32_8 : i32
    %10 = arith.extui %9 : i1 to i32
    %c0_i32_9 = arith.constant 0 : i32
    %11 = arith.cmpi ne, %10, %c0_i32_9 : i32
    scf.if %11 {
      %c0_10 = arith.constant 0 : index
      %c0_11 = arith.constant 0 : index
      %12 = vector.load %arg7[%c0_10, %c0_11] : memref<16x128xf32, #tpu.memory_space<vmem>>, vector<16x128xf32>
      %c0_12 = arith.constant 0 : index
      %c0_13 = arith.constant 0 : index
      %13 = vector.load %arg5[%c0_12, %c0_13] : memref<1x128xf32, #tpu.memory_space<vmem>>, vector<1x128xf32>
      %14 = vector.broadcast %13 : vector<1x128xf32> to vector<16x128xf32>
      %15 = arith.addf %12, %14 : vector<16x128xf32>
      %16 = arith.mulf %15, %15 : vector<16x128xf32>
      %17 = arith.mulf %15, %16 : vector<16x128xf32>
      %cst_14 = arith.constant 4.471500e-02 : f32
      %18 = vector.broadcast %cst_14 : f32 to vector<16x128xf32>
      %19 = arith.mulf %18, %17 : vector<16x128xf32>
      %20 = arith.addf %15, %19 : vector<16x128xf32>
      %cst_15 = arith.constant 0.797884583 : f32
      %21 = vector.broadcast %cst_15 : f32 to vector<16x128xf32>
      %22 = arith.mulf %21, %20 : vector<16x128xf32>
      %23 = math.tanh %22 : vector<16x128xf32>
      %cst_16 = arith.constant 1.000000e+00 : f32
      %24 = vector.broadcast %cst_16 : f32 to vector<16x128xf32>
      %25 = arith.addf %24, %23 : vector<16x128xf32>
      %cst_17 = arith.constant 5.000000e-01 : f32
      %26 = vector.broadcast %cst_17 : f32 to vector<16x128xf32>
      %27 = arith.mulf %26, %25 : vector<16x128xf32>
      %28 = arith.mulf %15, %27 : vector<16x128xf32>
      %c0_18 = arith.constant 0 : index
      %c0_19 = arith.constant 0 : index
      %29 = vector.load %arg6[%c0_18, %c0_19] : memref<16x128xf32, #tpu.memory_space<vmem>>, vector<16x128xf32>
      tpu.vector_store %arg6[%c0_18, %c0_19], %28 {strides = array<i32>} : memref<16x128xf32, #tpu.memory_space<vmem>>, vector<16x128xf32>,
    } else {
    }
    return
  }
  func.func @transform_0(%arg0: i32, %arg1: i32, %arg2: i32) -> (i32, i32) {
    %c0_i32 = arith.constant 0 : i32
    return %arg0, %arg2 : i32, i32
  }
  func.func @transform_1(%arg0: i32, %arg1: i32, %arg2: i32) -> (i32, i32) {
    %c0_i32 = arith.constant 0 : i32
    return %arg2, %arg1 : i32, i32
  }
  func.func @transform_2(%arg0: i32, %arg1: i32, %arg2: i32) -> (i32, i32) {
    %c0_i32 = arith.constant 0 : i32
    %c0_i32_0 = arith.constant 0 : i32
    return %c0_i32, %arg1 : i32, i32
  }
  func.func @transform_3(%arg0: i32, %arg1: i32, %arg2: i32) -> (i32, i32) {
    %c0_i32 = arith.constant 0 : i32
    return %arg0, %arg1 : i32, i32
  }
}

module attributes {stable_mosaic.version = 11 : i64} {
  func.func @_linear_kernel(%arg0: i32, %arg1: i32, %arg2: i32, %arg3: memref<8x32xbf16, #tpu.memory_space<vmem>>, %arg4: memref<32x8xbf16, #tpu.memory_space<vmem>>, %arg5: memref<1x8xf32, #tpu.memory_space<vmem>>, %arg6: memref<8x8xf32, #tpu.memory_space<vmem>>, %arg7: memref<8x8xf32, #tpu.memory_space<vmem>>) attributes {dimension_semantics = [#tpu.dimension_semantics<parallel>, #tpu.dimension_semantics<parallel>, #tpu.dimension_semantics<arbitrary>], iteration_bounds = array<i64: 1, 1, 1>, scalar_prefetch = 0 : i64, scratch_operands = 1 : i64, tpu.core_type = #tpu.core_type<tc>, window_params = [{transform_indices = @transform_0, window_bounds = array<i64: 8, 32>}, {transform_indices = @transform_1, window_bounds = array<i64: 32, 8>}, {transform_indices = @transform_2, window_bounds = array<i64: 1, 8>}, {transform_indices = @transform_3, window_bounds = array<i64: 8, 8>}]} {
    %c0_i32 = arith.constant 0 : i32
    %0 = arith.cmpi eq, %arg2, %c0_i32 : i32
    %1 = arith.extui %0 : i1 to i32
    %c0_i32_0 = arith.constant 0 : i32
    %2 = arith.cmpi ne, %1, %c0_i32_0 : i32
    scf.if %2 {
      %cst_10 = arith.constant 0.000000e+00 : f32
      %12 = vector.broadcast %cst_10 : f32 to vector<8x8xf32>
      %c0_11 = arith.constant 0 : index
      %c0_12 = arith.constant 0 : index
      %13 = vector.load %arg7[%c0_11, %c0_12] : memref<8x8xf32, #tpu.memory_space<vmem>>, vector<8x8xf32>
      tpu.vector_store %arg7[%c0_11, %c0_12], %12 {strides = array<i32>} : memref<8x8xf32, #tpu.memory_space<vmem>>, vector<8x8xf32>,
    } else {
    }
    %c0 = arith.constant 0 : index
    %c0_1 = arith.constant 0 : index
    %3 = vector.load %arg7[%c0, %c0_1] : memref<8x8xf32, #tpu.memory_space<vmem>>, vector<8x8xf32>
    %c0_2 = arith.constant 0 : index
    %c0_3 = arith.constant 0 : index
    %4 = vector.load %arg3[%c0_2, %c0_3] : memref<8x32xbf16, #tpu.memory_space<vmem>>, vector<8x32xbf16>
    %c0_4 = arith.constant 0 : index
    %c0_5 = arith.constant 0 : index
    %5 = vector.load %arg4[%c0_4, %c0_5] : memref<32x8xbf16, #tpu.memory_space<vmem>>, vector<32x8xbf16>
    %cst = arith.constant dense<0.000000e+00> : vector<8x8xf32>
    %6 = tpu.matmul %4, %5, %cst {dimension_numbers = #tpu.dot_dimension_numbers<[1], [0], [0], [1], [0, 0, 1, 1], [], []>} : vector<8x32xbf16>, vector<32x8xbf16>, vector<8x8xf32> -> vector<8x8xf32>
    %7 = arith.addf %3, %6 : vector<8x8xf32>
    %c0_6 = arith.constant 0 : index
    %c0_7 = arith.constant 0 : index
    %8 = vector.load %arg7[%c0_6, %c0_7] : memref<8x8xf32, #tpu.memory_space<vmem>>, vector<8x8xf32>
    tpu.vector_store %arg7[%c0_6, %c0_7], %7 {strides = array<i32>} : memref<8x8xf32, #tpu.memory_space<vmem>>, vector<8x8xf32>,
    %c0_i32_8 = arith.constant 0 : i32
    %9 = arith.cmpi eq, %arg2, %c0_i32_8 : i32
    %10 = arith.extui %9 : i1 to i32
    %c0_i32_9 = arith.constant 0 : i32
    %11 = arith.cmpi ne, %10, %c0_i32_9 : i32
    scf.if %11 {
      %c0_10 = arith.constant 0 : index
      %c0_11 = arith.constant 0 : index
      %12 = vector.load %arg7[%c0_10, %c0_11] : memref<8x8xf32, #tpu.memory_space<vmem>>, vector<8x8xf32>
      %c0_12 = arith.constant 0 : index
      %c0_13 = arith.constant 0 : index
      %13 = vector.load %arg5[%c0_12, %c0_13] : memref<1x8xf32, #tpu.memory_space<vmem>>, vector<1x8xf32>
      %14 = vector.broadcast %13 : vector<1x8xf32> to vector<8x8xf32>
      %15 = arith.addf %12, %14 : vector<8x8xf32>
      %c0_14 = arith.constant 0 : index
      %c0_15 = arith.constant 0 : index
      %16 = vector.load %arg6[%c0_14, %c0_15] : memref<8x8xf32, #tpu.memory_space<vmem>>, vector<8x8xf32>
      tpu.vector_store %arg6[%c0_14, %c0_15], %15 {strides = array<i32>} : memref<8x8xf32, #tpu.memory_space<vmem>>, vector<8x8xf32>,
    } else {
    }
    return
  }
  func.func @transform_0(%arg0: i32, %arg1: i32, %arg2: i32) -> (i32, i32) {
    %c0_i32 = arith.constant 0 : i32
    return %arg0, %arg2 : i32, i32
  }
  func.func @transform_1(%arg0: i32, %arg1: i32, %arg2: i32) -> (i32, i32) {
    %c0_i32 = arith.constant 0 : i32
    return %arg2, %arg1 : i32, i32
  }
  func.func @transform_2(%arg0: i32, %arg1: i32, %arg2: i32) -> (i32, i32) {
    %c0_i32 = arith.constant 0 : i32
    %c0_i32_0 = arith.constant 0 : i32
    return %c0_i32, %arg1 : i32, i32
  }
  func.func @transform_3(%arg0: i32, %arg1: i32, %arg2: i32) -> (i32, i32) {
    %c0_i32 = arith.constant 0 : i32
    return %arg0, %arg1 : i32, i32
  }
}

</mosaic_0001>

<llo_original>
// kernel: _lambda_.20
$region0: #{_lambda_.20}
  #allocation0 [shape = 'u32[]', space=smem, size = 0x4, offset = 0x4, fixed_abs, tag = 'smem constant byte address 0x4 - core index']
  #allocation1 [shape = 'u32[72,128]{1,0:T(1,128)}', space=vmem, size = 0x9000, scoped, tag = 'internal scratch']
  #allocation2 [shape = 'f32[16,96]{1,0:T(8,128)}', space=vmem, size = 0x2000, scoped, tag = 'scratch operand']
  %s0 = inlined_call_operand.vmem [shape: bf16[16,32], index: 0, kind: input, shape index: {}]
  %s1 = inlined_call_operand.vmem [shape: bf16[32,96], index: 1, kind: input, shape index: {}]
  %s2 = inlined_call_operand.vmem [shape: bf16[16,96], index: 2, kind: output, shape index: {}]
  %s3 = sld [smem:[#allocation0]]
  $region26: #{_lambda_.20} parent=0
    _
  %s5 = ssub.s32 1, %s3
  %s6 = scalar_select 0, %s5, %s3
  // Predicated region
  $region2: #{_lambda_.20} parent=0 // pred_check
    _
  $region3: #{_lambda_.20} parent=0 // pred_check_branch
    %8 = sbr.rel (0) target = $region5
  $region4: #{_lambda_.20} parent=0 // pred_region
    _
  $region5: #{_lambda_.20} parent=0 // pred_fallthru
    _
  // Predicated region
  $region6: #{_lambda_.20} parent=0 // pred_check
    _
  $region7: #{_lambda_.20} parent=0 // pred_check_branch
    %10 = sbr.rel (0) target = $region9
  $region8: #{_lambda_.20} parent=0 // pred_region
    _
  $region9: #{_lambda_.20} parent=0 // pred_fallthru
    _
  %p12 = scmp.eq.s32.totalorder 0, 0
  // Predicated region
  $region10: #{_lambda_.20} parent=0 // pred_check
    %p13 = pneg %p12
  $region11: #{_lambda_.20} parent=0 // pred_check_branch
    %15 = sbr.rel (%p13) target = $region13
  $region12: #{_lambda_.20} parent=0 // pred_region
    %vm16 = vcmask 785408
    %17 = vst.msk [vmem:[#allocation2] sm:$0xff] %vm16, 0.0
    %18 = vst.msk [vmem:[#allocation2 + $0x8] sm:$0xff] %vm16, 0.0
  $region13: #{_lambda_.20} parent=0 // pred_fallthru
    _
  %v19 = vld [vmem:[#allocation2] sm:$0xff]
  %v20 = vld [vmem:[#allocation2 + $0x8] sm:$0xff]
  %v21 = vld [vmem:[%s0] sm:$0xf]
  %v22 = vld [vmem:[%s0 + $0x4] sm:$0xf]
  %v23 = vld [vmem:[%s1] sm:$0xf]
  %v24 = vld [vmem:[%s1 + $0x4] sm:$0xf]
  %v25 = vld [vmem:[%s1 + $0x8] sm:$0xf]
  %v26 = vld [vmem:[%s1 + $0xc] sm:$0xf]
  %v29 = vunpack.c.l.b16 %v21
  %v30 = vunpack.c.l.b16 %v22
  %v31 = vpack.c.b16 %v30, %v29
  %v36 = vunpack.c.l.b16 %v23
  %v37 = vunpack.c.l.b16 %v24
  %v38 = vunpack.c.l.b16 %v25
  %v39 = vunpack.c.l.b16 %v26
  %v40 = vpack.c.b16 %v37, %v36
  %v41 = vpack.c.b16 %v39, %v38
  %vm44 = vcmask 261120
  %v46 = vsel %vm44, %v31, 0
  %48 = vmatpush.bf16.msra.mxu0 0
  %49 = vmatpush.bf16.msra.mxu0 0
  %50 = vmatpush.bf16.msra.mxu0 0
  %51 = vmatpush.bf16.msra.mxu0 0
  %52 = vmatpush.bf16.msra.mxu0 0
  %53 = vmatpush.bf16.msra.mxu0 0
  %54 = vmatpush.bf16.msra.mxu0 %v41
  %55 = vmatpush.bf16.msra.mxu0 %v40
  %56 = vmatmul.bf16.gmra.mxu0 %v46
  %v57 = vpop.f32.mrf.mxu0
  %v58 = vadd.f32 0.0, %v57
  %v59 = vpop.f32.mrf.mxu0
  %v60 = vadd.f32 0.0, %v59
  %61 = vdwg.mxu0
  %v62 = vadd.f32 %v19, %v58
  %v63 = vadd.f32 %v20, %v60
  %vm64 = vcmask 785408
  %65 = vst.msk [vmem:[#allocation2] sm:$0xff] %vm64, %v62
  %66 = vst.msk [vmem:[#allocation2 + $0x8] sm:$0xff] %vm64, %v63
  // Predicated region
  $region14: #{_lambda_.20} parent=0 // pred_check
    %p67 = pneg %p12
  $region15: #{_lambda_.20} parent=0 // pred_check_branch
    %69 = sbr.rel (%p67) target = $region17
  $region16: #{_lambda_.20} parent=0 // pred_region
    %v70 = vld [vmem:[#allocation2] sm:$0xff]
    %v71 = vld [vmem:[#allocation2 + $0x8] sm:$0xff]
    %v72 = vpack.c.bf16 %v70, %v70
    %v73 = vpack.c.bf16 %v71, %v71
    %vm74 = vcmask 781312
    %75 = vst.msk [vmem:[%s2] sm:$0xf] %vm74, %v72
    %76 = vst.msk [vmem:[%s2 + $0x4] sm:$0xf] %vm74, %v73
  $region17: #{_lambda_.20} parent=0 // pred_fallthru
    _
  // Predicated region
  $region18: #{_lambda_.20} parent=0 // pred_check
    _
  $region19: #{_lambda_.20} parent=0 // pred_check_branch
    %78 = sbr.rel (0) target = $region21
  $region20: #{_lambda_.20} parent=0 // pred_region
    _
  $region21: #{_lambda_.20} parent=0 // pred_fallthru
    _
  // Predicated region
  $region22: #{_lambda_.20} parent=0 // pred_check
    _
  $region23: #{_lambda_.20} parent=0 // pred_check_branch
    %80 = sbr.rel (0) target = $region25
  $region24: #{_lambda_.20} parent=0 // pred_region
    _
  $region25: #{_lambda_.20} parent=0 // pred_fallthru
    _

// kernel: _lambda_.19
$region0: #{_lambda_.19}
  #allocation0 [shape = 'u32[]', space=smem, size = 0x4, offset = 0x4, fixed_abs, tag = 'smem constant byte address 0x4 - core index']
  #allocation1 [shape = 'u32[72,128]{1,0:T(1,128)}', space=vmem, size = 0x9000, scoped, tag = 'internal scratch']
  %s0 = inlined_call_operand.vmem [shape: f32[16,32], index: 0, kind: input, shape index: {}]
  %s1 = inlined_call_operand.vmem [shape: f32[1,32], index: 1, kind: input, shape index: {}]
  %s2 = inlined_call_operand.vmem [shape: f32[1,32], index: 2, kind: input, shape index: {}]
  %s3 = inlined_call_operand.vmem [shape: f32[16,32], index: 3, kind: output, shape index: {}]
  %s4 = sld [smem:[#allocation0]]
  $region22: #{_lambda_.19} parent=0
    _
  %s6 = ssub.s32 1, %s4
  %s7 = scalar_select 0, %s6, %s4
  // Predicated region
  $region2: #{_lambda_.19} parent=0 // pred_check
    _
  $region3: #{_lambda_.19} parent=0 // pred_check_branch
    %9 = sbr.rel (0) target = $region5
  $region4: #{_lambda_.19} parent=0 // pred_region
    _
  $region5: #{_lambda_.19} parent=0 // pred_fallthru
    _
  // Predicated region
  $region6: #{_lambda_.19} parent=0 // pred_check
    _
  $region7: #{_lambda_.19} parent=0 // pred_check_branch
    %11 = sbr.rel (0) target = $region9
  $region8: #{_lambda_.19} parent=0 // pred_region
    _
  $region9: #{_lambda_.19} parent=0 // pred_fallthru
    _
  // Predicated region
  $region10: #{_lambda_.19} parent=0 // pred_check
    _
  $region11: #{_lambda_.19} parent=0 // pred_check_branch
    %13 = sbr.rel (0) target = $region13
  $region12: #{_lambda_.19} parent=0 // pred_region
    _
  $region13: #{_lambda_.19} parent=0 // pred_fallthru
    _
  %v14 = vld [vmem:[%s0] sm:$0xff]
  %v15 = vld [vmem:[%s0 + $0x8] sm:$0xff]
  %vm16 = vcmask 261120
  %v17 = vsel %vm16, %v14, 0.0
  %18 = vadd.xlane.f32.xlu0 %v17
  %v19 = vpop.xlane.xlu0 %18
  %v20 = vsel %vm16, %v15, 0.0
  %21 = vadd.xlane.f32.xlu0 %v20
  %v22 = vpop.xlane.xlu0 %21
  %v23 = vrcp.pop 32.0
  %v24 = vmul.f32 32.0, %v23
  %v25 = vsub.f32 1.0, %v24
  %v26 = vmul.f32 %v23, %v25
  %v27 = vadd.f32 %v23, %v26
  %vm28 = vweird.f32 %v23
  %v29 = vsel %vm28, %v23, %v27
  %v30 = vmul.f32 %v19, %v29
  %v31 = vmul.f32 %v22, %v29
  %v32 = vsub.f32 %v14, %v30
  %v33 = vsub.f32 %v15, %v31
  %v34 = vmul.f32 %v32, %v32
  %v35 = vmul.f32 %v33, %v33
  %v36 = vsel %vm16, %v34, 0.0
  %37 = vadd.xlane.f32.xlu0 %v36
  %v38 = vpop.xlane.xlu0 %37
  %v39 = vsel %vm16, %v35, 0.0
  %40 = vadd.xlane.f32.xlu0 %v39
  %v41 = vpop.xlane.xlu0 %40
  %v42 = vmul.f32 %v38, %v29
  %v43 = vmul.f32 %v41, %v29
  %v44 = vadd.f32 %v42, 1e-05
  %v45 = vadd.f32 %v43, 1e-05
  %v46 = vrsqrt.pop %v44
  %v47 = vmul.f32 %v46, %v44
  %v48 = vmul.f32 %v47, %v46
  %v49 = vmul.f32 0.5, %v48
  %v50 = vsub.f32 1.5, %v49
  %v51 = vmul.f32 %v46, %v50
  %vm52 = vweird.f32 %v44
  %vm53 = vweird.f32 %v46
  %vm54 = vmor %vm52, %vm53
  %v55 = vsel %vm54, %v46, %v51
  %v56 = vrsqrt.pop %v45
  %v57 = vmul.f32 %v56, %v45
  %v58 = vmul.f32 %v57, %v56
  %v59 = vmul.f32 0.5, %v58
  %v60 = vsub.f32 1.5, %v59
  %v61 = vmul.f32 %v56, %v60
  %vm62 = vweird.f32 %v45
  %vm63 = vweird.f32 %v56
  %vm64 = vmor %vm62, %vm63
  %v65 = vsel %vm64, %v56, %v61
  %v66 = vmul.f32 %v32, %v55
  %v67 = vmul.f32 %v33, %v65
  %v68 = vld [vmem:[%s1] sm:$0x1]
  %v70 = vperm.slane %v68, 0
  %v72 = vmul.f32 %v66, %v70
  %v73 = vmul.f32 %v67, %v70
  %v74 = vld [vmem:[%s2] sm:$0x1]
  %v76 = vperm.slane %v74, 0
  %v78 = vadd.f32 %v72, %v76
  %v79 = vadd.f32 %v73, %v76
  %80 = vst.msk [vmem:[%s3] sm:$0xff] %vm16, %v78
  %81 = vst.msk [vmem:[%s3 + $0x8] sm:$0xff] %vm16, %v79
  // Predicated region
  $region14: #{_lambda_.19} parent=0 // pred_check
    _
  $region15: #{_lambda_.19} parent=0 // pred_check_branch
    %83 = sbr.rel (0) target = $region17
  $region16: #{_lambda_.19} parent=0 // pred_region
    _
  $region17: #{_lambda_.19} parent=0 // pred_fallthru
    _
  // Predicated region
  $region18: #{_lambda_.19} parent=0 // pred_check
    _
  $region19: #{_lambda_.19} parent=0 // pred_check_branch
    %85 = sbr.rel (0) target = $region21
  $region20: #{_lambda_.19} parent=0 // pred_region
    _
  $region21: #{_lambda_.19} parent=0 // pred_fallthru
    _

// kernel: _lambda_.21
$region0: #{_lambda_.21}
  #allocation0 [shape = 'u32[]', space=smem, size = 0x4, offset = 0x4, fixed_abs, tag = 'smem constant byte address 0x4 - core index']
  #allocation1 [shape = 'u32[72,128]{1,0:T(1,128)}', space=vmem, size = 0x9000, scoped, tag = 'internal scratch']
  %s0 = inlined_call_operand.vmem [shape: bf16[2,6,96], index: 0, kind: input, shape index: {}]
  %s1 = inlined_call_operand.vmem [shape: f32[2,6,32], index: 1, kind: output, shape index: {}]
  %s2 = sld [smem:[#allocation0]]
  $region37: #{_lambda_.21} parent=0
    _
  %s4 = ssub.s32 1, %s2
  %s5 = scalar_select 0, %s4, %s2
  loop: start=0, step=1, limit=4
  $region2: #{_lambda_.21} parent=0 // loop_pre_header
    _
  $region3: #{_lambda_.21} parent=0 // loop_header
    %s7 = sphi 0, %s11
    %p8 = scmp.ge.s32.totalorder %s7, 4
    %s17 = sphi 0, %s19
    %s20 = sphi 0, %s17
    %s21 = sphi 0, %s20
    %s37 = sphi 0, %s21
    %s43 = sphi 0, %s45
    %s46 = sphi 0, %s43
    %s47 = sphi 0, %s46
    %s63 = sphi 0, %s47
  $region4: #{_lambda_.21} parent=0 // loop_header_branch
    %10 = sbr.rel (%p8) target = $region8
  $region5: #{_lambda_.21} parent=0 // loop_body
    %s12 = ssub.s32 %s7, 1
    %s13 = ssub.s32 %s7, 2
    %s14 = sadd.s32 %s7, 1
    %s15 = ssub.s32 %s7, %s14
    %p16 = scmp.eq.s32.totalorder %s15, 0
    %s18 = sadd.s32 %s17, 1
    %s19 = scalar_select %p16, %s17, %s18
    %p22 = pneg %p16
    %p23 = scmp.eq.s32.totalorder %s7, 1
    %p24 = por %p22, %p23
    %p25 = scmp.ne.s32.totalorder %s17, %s20
    %p26 = scmp.eq.s32.totalorder %s7, 0
    %p27 = por %p25, %p26
    %p28 = scmp.ne.s32.totalorder %s17, %s20
    %p29 = scmp.eq.s32.totalorder %s12, 1
    %p30 = por %p28, %p29
    %p31 = scmp.ne.s32.totalorder %s20, %s21
    %p32 = scmp.eq.s32.totalorder %s12, 0
    %p33 = por %p31, %p32
    %p34 = scmp.ne.s32.totalorder %s20, %s21
    %p35 = scmp.eq.s32.totalorder %s13, 1
    %p36 = por %p34, %p35
    %p38 = scmp.ne.s32.totalorder %s21, %s37
    %p39 = scmp.eq.s32.totalorder %s13, 0
    %p40 = por %p38, %p39
    %s41 = ssub.s32 %s7, %s14
    %p42 = scmp.eq.s32.totalorder %s41, 0
    %s44 = sadd.s32 %s43, 1
    %s45 = scalar_select %p42, %s43, %s44
    %p48 = pneg %p42
    %p49 = scmp.eq.s32.totalorder %s7, 1
    %p50 = por %p48, %p49
    %p51 = scmp.ne.s32.totalorder %s43, %s46
    %p52 = scmp.eq.s32.totalorder %s7, 0
    %p53 = por %p51, %p52
    %p54 = scmp.ne.s32.totalorder %s43, %s46
    %p55 = scmp.eq.s32.totalorder %s12, 1
    %p56 = por %p54, %p55
    %p57 = scmp.ne.s32.totalorder %s46, %s47
    %p58 = scmp.eq.s32.totalorder %s12, 0
    %p59 = por %p57, %p58
    %p60 = scmp.ne.s32.totalorder %s46, %s47
    %p61 = scmp.eq.s32.totalorder %s13, 1
    %p62 = por %p60, %p61
    %p64 = scmp.ne.s32.totalorder %s47, %s63
    %p65 = scmp.eq.s32.totalorder %s13, 0
    %p66 = por %p64, %p65
    %p67 = scmp.le.s32.totalorder 1, %s7
    %p68 = scmp.lt.s32.totalorder %s7, 3
    %p69 = pnand %p67, %p68
    %p70 = pneg %p69
    // Predicated region
    $region9: #{_lambda_.21} parent=5 // pred_check
      _
    $region10: #{_lambda_.21} parent=5 // pred_check_branch
      %72 = sbr.rel (%p69) target = $region12
    $region11: #{_lambda_.21} parent=5 // pred_region
      %s73 = ssub.s32 %s7, 1
    $region12: #{_lambda_.21} parent=5 // pred_fallthru
      _
    %p74 = scmp.lt.s32.totalorder %s7, 2
    // Predicated region
    $region13: #{_lambda_.21} parent=5 // pred_check
      %p75 = pneg %p74
    $region14: #{_lambda_.21} parent=5 // pred_check_branch
      %77 = sbr.rel (%p75) target = $region16
    $region15: #{_lambda_.21} parent=5 // pred_region
      // Predicated region
      $region17: #{_lambda_.21} parent=15 // pred_check
        %p78 = pneg %p27
      $region18: #{_lambda_.21} parent=15 // pred_check_branch
        %80 = sbr.rel (%p78) target = $region20
      $region19: #{_lambda_.21} parent=15 // pred_region
        %p81 = scmp.lt.s32.totalorder %s7, 1
        %s82 = scalar_select %p81, %s7, 1
        %s83 = smul.addr %s82, 4
        %s84 = scalar_lea.vmem %s0, %s83
      $region20: #{_lambda_.21} parent=15 // pred_fallthru
        _
    $region16: #{_lambda_.21} parent=5 // pred_fallthru
      _
    %p85 = scmp.le.s32.totalorder 1, %s7
    %p86 = scmp.lt.s32.totalorder %s7, 3
    %p87 = pnand %p85, %p86
    %p88 = pneg %p87
    // Predicated region
    $region21: #{_lambda_.21} parent=5 // pred_check
      _
    $region22: #{_lambda_.21} parent=5 // pred_check_branch
      %90 = sbr.rel (%p87) target = $region24
    $region23: #{_lambda_.21} parent=5 // pred_region
      %s91 = ssub.s32 %s7, 1
      %p92 = scmp.lt.s32.totalorder %s12, 1
      %s93 = scalar_select %p92, %s12, 1
      %s94 = smul.addr %s93, 4
      %s95 = scalar_lea.vmem %s0, %s94
      %p96 = pneg %p33
      %p97 = pneg %p30
      %p98 = pneg %p59
      %p99 = pneg %p56
      %p100 = scmp.lt.s32.totalorder %s12, 1
      %s101 = scalar_select %p100, %s12, 1
      %s102 = smul.addr %s101, 8
      %s103 = scalar_lea.vmem %s1, %s102
      %p104 = scmp.lt.s32.totalorder %s12, 1
      %s105 = scalar_select %p104, %s12, 1
      %s106 = smul.addr %s105, 4
      %s107 = scalar_lea.vmem %s0, %s106
      %p108 = scmp.lt.s32.totalorder %s12, 1
      %s109 = scalar_select %p108, %s12, 1
      %s110 = smul.addr %s109, 8
      %s111 = scalar_lea.vmem %s1, %s110
      %v113 = vld [vmem:[%s107] sm:$0x7]
      %v114 = vunpack.c.l.bf16 %v113
      %v115 = vmul.f32 %v114, 0.35351563
      %v116 = vpack.c.bf16 %v115, %v115
      %v118 = vunpack.c.l.b16 %v113
      %v119 = vpack.c.b16 %v118, %v118
      %120 = vrot.lane.b32.xlu0 %v119, 96
      %v121 = vpop.permute.xlu0 %120
      %vm122 = vcmask 64512
      %v124 = vsel %vm122, %v116, 0
      %v127 = vsel %vm122, %v121, 0
      %129 = vmatpush.bf16.xpose.msra.mxu0 0
      %130 = vmatpush.bf16.xpose.msra.mxu0 0
      %131 = vmatpush.bf16.xpose.msra.mxu0 0
      %132 = vmatpush.bf16.xpose.msra.mxu0 0
      %133 = vmatpush.bf16.xpose.msra.mxu0 0
      %134 = vmatpush.bf16.xpose.msra.mxu0 0
      %135 = vmatpush.bf16.xpose.msra.mxu0 0
      %136 = vmatpush.bf16.xpose.msra.mxu0 %v127
      %137 = vmatmul.bf16.gmra.mxu0 %v124
      %v138 = vpop.f32.mrf.mxu0
      %v139 = vadd.f32 0.0, %v138
      %v140 = vpop.f32.mrf.mxu0
      %141 = vdwg.mxu0
      %vm142 = vcmask 46080
      %v143 = vsel %vm142, %v139, -inf
      %144 = vmax.xlane.f32.xlu0 %v143
      %v145 = vpop.xlane.xlu0 %144
      %v146 = vsub.f32 %v139, %v145
      %v147 = vmul.f32 %v146, 1.442695
      %v148 = vpow.pop %v147
      %v149 = vsel %vm142, %v148, 0.0
      %150 = vadd.xlane.f32.xlu0 %v149
      %v151 = vpop.xlane.xlu0 %150
      %v152 = vrcp.pop %v151
      %v153 = vmul.f32 %v148, %v152
      %v154 = vpack.c.bf16 %v153, %v153
      %155 = vrot.lane.b32.xlu0 %v119, 64
      %v156 = vpop.permute.xlu0 %155
      %vm157 = vcmask 48128
      %v159 = vsel %vm157, %v154, 0
      %vm161 = vcmask 1042432
      %v163 = vsel %vm161, %v156, 0
      %165 = vmatpush.bf16.msra.mxu0 0
      %166 = vmatpush.bf16.msra.mxu0 0
      %167 = vmatpush.bf16.msra.mxu0 0
      %168 = vmatpush.bf16.msra.mxu0 0
      %169 = vmatpush.bf16.msra.mxu0 0
      %170 = vmatpush.bf16.msra.mxu0 0
      %171 = vmatpush.bf16.msra.mxu0 0
      %172 = vmatpush.bf16.msra.mxu0 %v163
      %173 = vmatmul.bf16.gmra.mxu0 %v159
      %v174 = vpop.f32.mrf.mxu0
      %v175 = vadd.f32 0.0, %v174
      %v176 = vpop.f32.mrf.mxu0
      %177 = vdwg.mxu0
      %vm178 = vcmask 62464
      %179 = vst.msk [vmem:[%s111] sm:$0x3f] %vm178, %v175
      %181 = vrot.lane.b32.xlu0 %v116, 120
      %v182 = vpop.permute.xlu0 %181
      %183 = vrot.lane.b32.xlu0 %v119, 88
      %v184 = vpop.permute.xlu0 %183
      %v186 = vsel %vm122, %v182, 0
      %v189 = vsel %vm122, %v184, 0
      %191 = vmatpush.bf16.xpose.msra.mxu0 0
      %192 = vmatpush.bf16.xpose.msra.mxu0 0
      %193 = vmatpush.bf16.xpose.msra.mxu0 0
      %194 = vmatpush.bf16.xpose.msra.mxu0 0
      %195 = vmatpush.bf16.xpose.msra.mxu0 0
      %196 = vmatpush.bf16.xpose.msra.mxu0 0
      %197 = vmatpush.bf16.xpose.msra.mxu0 0
      %198 = vmatpush.bf16.xpose.msra.mxu0 %v189
      %199 = vmatmul.bf16.gmra.mxu0 %v186
      %v200 = vpop.f32.mrf.mxu0
      %v201 = vadd.f32 0.0, %v200
      %v202 = vpop.f32.mrf.mxu0
      %203 = vdwg.mxu0
      %v204 = vsel %vm142, %v201, -inf
      %205 = vmax.xlane.f32.xlu0 %v204
      %v206 = vpop.xlane.xlu0 %205
      %v207 = vsub.f32 %v201, %v206
      %v208 = vmul.f32 %v207, 1.442695
      %v209 = vpow.pop %v208
      %v210 = vsel %vm142, %v209, 0.0
      %211 = vadd.xlane.f32.xlu0 %v210
      %v212 = vpop.xlane.xlu0 %211
      %v213 = vrcp.pop %v212
      %v214 = vmul.f32 %v209, %v213
      %v215 = vpack.c.bf16 %v214, %v214
      %216 = vrot.lane.b32.xlu0 %v119, 56
      %v217 = vpop.permute.xlu0 %216
      %v219 = vsel %vm157, %v215, 0
      %v222 = vsel %vm161, %v217, 0
      %224 = vmatpush.bf16.msra.mxu0 0
      %225 = vmatpush.bf16.msra.mxu0 0
      %226 = vmatpush.bf16.msra.mxu0 0
      %227 = vmatpush.bf16.msra.mxu0 0
      %228 = vmatpush.bf16.msra.mxu0 0
      %229 = vmatpush.bf16.msra.mxu0 0
      %230 = vmatpush.bf16.msra.mxu0 0
      %231 = vmatpush.bf16.msra.mxu0 %v222
      %232 = vmatmul.bf16.gmra.mxu0 %v219
      %v233 = vpop.f32.mrf.mxu0
      %v234 = vadd.f32 0.0, %v233
      %v235 = vpop.f32.mrf.mxu0
      %236 = vdwg.mxu0
      %238 = vrot.lane.b32.xlu0 %v234, 8
      %v239 = vpop.permute.xlu0 %238
      %vm241 = vcmask 128064
      %242 = vst.msk [vmem:[%s111] sm:$0x3f] %vm241, %v239
      %243 = vrot.lane.b32.xlu0 %v116, 112
      %v244 = vpop.permute.xlu0 %243
      %245 = vrot.lane.b32.xlu0 %v119, 80
      %v246 = vpop.permute.xlu0 %245
      %v248 = vsel %vm122, %v244, 0
      %v251 = vsel %vm122, %v246, 0
      %253 = vmatpush.bf16.xpose.msra.mxu0 0
      %254 = vmatpush.bf16.xpose.msra.mxu0 0
      %255 = vmatpush.bf16.xpose.msra.mxu0 0
      %256 = vmatpush.bf16.xpose.msra.mxu0 0
      %257 = vmatpush.bf16.xpose.msra.mxu0 0
      %258 = vmatpush.bf16.xpose.msra.mxu0 0
      %259 = vmatpush.bf16.xpose.msra.mxu0 0
      %260 = vmatpush.bf16.xpose.msra.mxu0 %v251
      %261 = vmatmul.bf16.gmra.mxu0 %v248
      %v262 = vpop.f32.mrf.mxu0
      %v263 = vadd.f32 0.0, %v262
      %v264 = vpop.f32.mrf.mxu0
      %265 = vdwg.mxu0
      %v266 = vsel %vm142, %v263, -inf
      %267 = vmax.xlane.f32.xlu0 %v266
      %v268 = vpop.xlane.xlu0 %267
      %v269 = vsub.f32 %v263, %v268
      %v270 = vmul.f32 %v269, 1.442695
      %v271 = vpow.pop %v270
      %v272 = vsel %vm142, %v271, 0.0
      %273 = vadd.xlane.f32.xlu0 %v272
      %v274 = vpop.xlane.xlu0 %273
      %v275 = vrcp.pop %v274
      %v276 = vmul.f32 %v271, %v275
      %v277 = vpack.c.bf16 %v276, %v276
      %278 = vrot.lane.b32.xlu0 %v119, 48
      %v279 = vpop.permute.xlu0 %278
      %v281 = vsel %vm157, %v277, 0
      %v284 = vsel %vm161, %v279, 0
      %286 = vmatpush.bf16.msra.mxu0 0
      %287 = vmatpush.bf16.msra.mxu0 0
      %288 = vmatpush.bf16.msra.mxu0 0
      %289 = vmatpush.bf16.msra.mxu0 0
      %290 = vmatpush.bf16.msra.mxu0 0
      %291 = vmatpush.bf16.msra.mxu0 0
      %292 = vmatpush.bf16.msra.mxu0 0
      %293 = vmatpush.bf16.msra.mxu0 %v284
      %294 = vmatmul.bf16.gmra.mxu0 %v281
      %v295 = vpop.f32.mrf.mxu0
      %v296 = vadd.f32 0.0, %v295
      %v297 = vpop.f32.mrf.mxu0
      %298 = vdwg.mxu0
      %300 = vrot.lane.b32.xlu0 %v296, 16
      %v301 = vpop.permute.xlu0 %300
      %vm303 = vcmask 193664
      %304 = vst.msk [vmem:[%s111] sm:$0x3f] %vm303, %v301
      %305 = vrot.lane.b32.xlu0 %v116, 104
      %v306 = vpop.permute.xlu0 %305
      %307 = vrot.lane.b32.xlu0 %v119, 72
      %v308 = vpop.permute.xlu0 %307
      %v310 = vsel %vm122, %v306, 0
      %v313 = vsel %vm122, %v308, 0
      %315 = vmatpush.bf16.xpose.msra.mxu0 0
      %316 = vmatpush.bf16.xpose.msra.mxu0 0
      %317 = vmatpush.bf16.xpose.msra.mxu0 0
      %318 = vmatpush.bf16.xpose.msra.mxu0 0
      %319 = vmatpush.bf16.xpose.msra.mxu0 0
      %320 = vmatpush.bf16.xpose.msra.mxu0 0
      %321 = vmatpush.bf16.xpose.msra.mxu0 0
      %322 = vmatpush.bf16.xpose.msra.mxu0 %v313
      %323 = vmatmul.bf16.gmra.mxu0 %v310
      %v324 = vpop.f32.mrf.mxu0
      %v325 = vadd.f32 0.0, %v324
      %v326 = vpop.f32.mrf.mxu0
      %327 = vdwg.mxu0
      %v328 = vsel %vm142, %v325, -inf
      %329 = vmax.xlane.f32.xlu0 %v328
      %v330 = vpop.xlane.xlu0 %329
      %v331 = vsub.f32 %v325, %v330
      %v332 = vmul.f32 %v331, 1.442695
      %v333 = vpow.pop %v332
      %v334 = vsel %vm142, %v333, 0.0
      %335 = vadd.xlane.f32.xlu0 %v334
      %v336 = vpop.xlane.xlu0 %335
      %v337 = vrcp.pop %v336
      %v338 = vmul.f32 %v333, %v337
      %v339 = vpack.c.bf16 %v338, %v338
      %340 = vrot.lane.b32.xlu0 %v119, 40
      %v341 = vpop.permute.xlu0 %340
      %v343 = vsel %vm157, %v339, 0
      %v346 = vsel %vm161, %v341, 0
      %348 = vmatpush.bf16.msra.mxu0 0
      %349 = vmatpush.bf16.msra.mxu0 0
      %350 = vmatpush.bf16.msra.mxu0 0
      %351 = vmatpush.bf16.msra.mxu0 0
      %352 = vmatpush.bf16.msra.mxu0 0
      %353 = vmatpush.bf16.msra.mxu0 0
      %354 = vmatpush.bf16.msra.mxu0 0
      %355 = vmatpush.bf16.msra.mxu0 %v346
      %356 = vmatmul.bf16.gmra.mxu0 %v343
      %v357 = vpop.f32.mrf.mxu0
      %v358 = vadd.f32 0.0, %v357
      %v359 = vpop.f32.mrf.mxu0
      %360 = vdwg.mxu0
      %362 = vrot.lane.b32.xlu0 %v358, 24
      %v363 = vpop.permute.xlu0 %362
      %vm365 = vcmask 259264
      %366 = vst.msk [vmem:[%s111] sm:$0x3f] %vm365, %v363
      %p367 = scmp.lt.s32.totalorder %s12, 1
      %s368 = scalar_select %p367, %s12, 1
      %s369 = smul.addr %s368, 8
      %s370 = scalar_lea.vmem %s1, %s369
      // Predicated region
      $region25: #{_lambda_.21} parent=23 // pred_check
        %p371 = pneg %p56
      $region26: #{_lambda_.21} parent=23 // pred_check_branch
        %373 = sbr.rel (%p371) target = $region28
      $region27: #{_lambda_.21} parent=23 // pred_region
        _
      $region28: #{_lambda_.21} parent=23 // pred_fallthru
        _
    $region24: #{_lambda_.21} parent=5 // pred_fallthru
      _
    %p374 = scmp.le.s32.totalorder 2, %s7
    // Predicated region
    $region29: #{_lambda_.21} parent=5 // pred_check
      %p375 = pneg %p374
    $region30: #{_lambda_.21} parent=5 // pred_check_branch
      %377 = sbr.rel (%p375) target = $region32
    $region31: #{_lambda_.21} parent=5 // pred_region
      %s378 = ssub.s32 %s7, 2
      // Predicated region
      $region33: #{_lambda_.21} parent=31 // pred_check
        %p379 = pneg %p62
      $region34: #{_lambda_.21} parent=31 // pred_check_branch
        %381 = sbr.rel (%p379) target = $region36
      $region35: #{_lambda_.21} parent=31 // pred_region
        %p382 = scmp.lt.s32.totalorder %s13, 1
        %s383 = scalar_select %p382, %s13, 1
        %s384 = smul.addr %s383, 8
        %s385 = scalar_lea.vmem %s1, %s384
      $region36: #{_lambda_.21} parent=31 // pred_fallthru
        _
    $region32: #{_lambda_.21} parent=5 // pred_fallthru
      _
  $region6: #{_lambda_.21} parent=0 // loop_footer
    %s11 = sadd.s32 1, %s7
  $region7: #{_lambda_.21} parent=0 // loop_footer_branch
    %6 = sbr.rel target = $region3
  $region8: #{_lambda_.21} parent=0 // loop_exit
    _

// kernel: _lambda_.18
$region0: #{_lambda_.18}
  #allocation0 [shape = 'u32[]', space=smem, size = 0x4, offset = 0x4, fixed_abs, tag = 'smem constant byte address 0x4 - core index']
  #allocation1 [shape = 'u32[72,128]{1,0:T(1,128)}', space=vmem, size = 0x9000, scoped, tag = 'internal scratch']
  #allocation2 [shape = 'f32[8,32]{1,0:T(8,128)}', space=vmem, size = 0x1000, scoped, tag = 'scratch operand']
  %s0 = inlined_call_operand.vmem [shape: bf16[8,192], index: 0, kind: input, shape index: {}]
  %s1 = inlined_call_operand.vmem [shape: bf16[192,32], index: 1, kind: input, shape index: {}]
  %s2 = inlined_call_operand.vmem [shape: f32[1,32], index: 2, kind: input, shape index: {}]
  %s3 = inlined_call_operand.vmem [shape: f32[8,32], index: 3, kind: output, shape index: {}]
  %s4 = sld [smem:[#allocation0]]
  $region30: #{_lambda_.18} parent=0
    _
  %s6 = ssub.s32 1, %s4
  %s7 = scalar_select 0, %s6, %s4
  // Predicated region
  $region2: #{_lambda_.18} parent=0 // pred_check
    _
  $region3: #{_lambda_.18} parent=0 // pred_check_branch
    %9 = sbr.rel (0) target = $region5
  $region4: #{_lambda_.18} parent=0 // pred_region
    _
  $region5: #{_lambda_.18} parent=0 // pred_fallthru
    _
  // Predicated region
  $region6: #{_lambda_.18} parent=0 // pred_check
    _
  $region7: #{_lambda_.18} parent=0 // pred_check_branch
    %11 = sbr.rel (0) target = $region9
  $region8: #{_lambda_.18} parent=0 // pred_region
    _
  $region9: #{_lambda_.18} parent=0 // pred_fallthru
    _
  // Predicated region
  $region10: #{_lambda_.18} parent=0 // pred_check
    _
  $region11: #{_lambda_.18} parent=0 // pred_check_branch
    %13 = sbr.rel (0) target = $region13
  $region12: #{_lambda_.18} parent=0 // pred_region
    _
  $region13: #{_lambda_.18} parent=0 // pred_fallthru
    _
  %p15 = scmp.eq.s32.totalorder 0, 0
  // Predicated region
  $region14: #{_lambda_.18} parent=0 // pred_check
    %p16 = pneg %p15
  $region15: #{_lambda_.18} parent=0 // pred_check_branch
    %18 = sbr.rel (%p16) target = $region17
  $region16: #{_lambda_.18} parent=0 // pred_region
    %vm19 = vcmask 261120
    %20 = vst.msk [vmem:[#allocation2] sm:$0xff] %vm19, 0.0
  $region17: #{_lambda_.18} parent=0 // pred_fallthru
    _
  %v21 = vld [vmem:[#allocation2] sm:$0xff]
  %v22 = vld [vmem:[%s0] sm:$0xff]
  %v23 = vld [vmem:[%s1] sm:$0xf]
  %v24 = vld [vmem:[%s1 + $0x4] sm:$0xf]
  %v25 = vld [vmem:[%s1 + $0x8] sm:$0xf]
  %v26 = vld [vmem:[%s1 + $0xc] sm:$0xf]
  %v27 = vld [vmem:[%s1 + $0x10] sm:$0xf]
  %v28 = vld [vmem:[%s1 + $0x14] sm:$0xf]
  %v29 = vld [vmem:[%s1 + $0x18] sm:$0xf]
  %v30 = vld [vmem:[%s1 + $0x1c] sm:$0xf]
  %v31 = vld [vmem:[%s1 + $0x20] sm:$0xf]
  %v32 = vld [vmem:[%s1 + $0x24] sm:$0xf]
  %v33 = vld [vmem:[%s1 + $0x28] sm:$0xf]
  %v34 = vld [vmem:[%s1 + $0x2c] sm:$0xf]
  %v35 = vld [vmem:[%s1 + $0x30] sm:$0xf]
  %v36 = vld [vmem:[%s1 + $0x34] sm:$0xf]
  %v37 = vld [vmem:[%s1 + $0x38] sm:$0xf]
  %v38 = vld [vmem:[%s1 + $0x3c] sm:$0xf]
  %v39 = vld [vmem:[%s1 + $0x40] sm:$0xf]
  %v40 = vld [vmem:[%s1 + $0x44] sm:$0xf]
  %v41 = vld [vmem:[%s1 + $0x48] sm:$0xf]
  %v42 = vld [vmem:[%s1 + $0x4c] sm:$0xf]
  %v43 = vld [vmem:[%s1 + $0x50] sm:$0xf]
  %v44 = vld [vmem:[%s1 + $0x54] sm:$0xf]
  %v45 = vld [vmem:[%s1 + $0x58] sm:$0xf]
  %v46 = vld [vmem:[%s1 + $0x5c] sm:$0xf]
  %v48 = vunpack.c.l.b16 %v22
  %v49 = vunpack.c.h.b16 %v22
  %v50 = vpack.c.b16 %v48, %v48
  %v51 = vpack.c.b16 %v49, %v49
  %v77 = vunpack.c.l.b16 %v23
  %v78 = vunpack.c.l.b16 %v24
  %v79 = vunpack.c.l.b16 %v25
  %v80 = vunpack.c.l.b16 %v26
  %v81 = vunpack.c.l.b16 %v27
  %v82 = vunpack.c.l.b16 %v28
  %v83 = vunpack.c.l.b16 %v29
  %v84 = vunpack.c.l.b16 %v30
  %v85 = vunpack.c.l.b16 %v31
  %v86 = vunpack.c.l.b16 %v32
  %v87 = vunpack.c.l.b16 %v33
  %v88 = vunpack.c.l.b16 %v34
  %v89 = vunpack.c.l.b16 %v35
  %v90 = vunpack.c.l.b16 %v36
  %v91 = vunpack.c.l.b16 %v37
  %v92 = vunpack.c.l.b16 %v38
  %v93 = vunpack.c.l.b16 %v39
  %v94 = vunpack.c.l.b16 %v40
  %v95 = vunpack.c.l.b16 %v41
  %v96 = vunpack.c.l.b16 %v42
  %v97 = vunpack.c.l.b16 %v43
  %v98 = vunpack.c.l.b16 %v44
  %v99 = vunpack.c.l.b16 %v45
  %v100 = vunpack.c.l.b16 %v46
  %v101 = vpack.c.b16 %v78, %v77
  %v102 = vpack.c.b16 %v80, %v79
  %v103 = vpack.c.b16 %v82, %v81
  %v104 = vpack.c.b16 %v84, %v83
  %v105 = vpack.c.b16 %v86, %v85
  %v106 = vpack.c.b16 %v88, %v87
  %v107 = vpack.c.b16 %v90, %v89
  %v108 = vpack.c.b16 %v92, %v91
  %v109 = vpack.c.b16 %v94, %v93
  %v110 = vpack.c.b16 %v96, %v95
  %v111 = vpack.c.b16 %v98, %v97
  %v112 = vpack.c.b16 %v100, %v99
  %vm125 = vcmask 523264
  %v127 = vsel %vm125, %v51, 0
  %129 = vmatpush.bf16.msra.mxu0 %v108
  %130 = vmatpush.bf16.msra.mxu0 %v107
  %131 = vmatpush.bf16.msra.mxu0 %v106
  %132 = vmatpush.bf16.msra.mxu0 %v105
  %133 = vmatpush.bf16.msra.mxu0 %v104
  %134 = vmatpush.bf16.msra.mxu0 %v103
  %135 = vmatpush.bf16.msra.mxu0 %v102
  %136 = vmatpush.bf16.msra.mxu0 %v101
  %137 = vmatmul.bf16.gmra.mxu0 %v50
  %v138 = vpop.f32.mrf.mxu0
  %v139 = vadd.f32 0.0, %v138
  %v140 = vpop.f32.mrf.mxu0
  %141 = vdwg.mxu0
  %142 = vmatpush.bf16.msra.mxu0 0
  %143 = vmatpush.bf16.msra.mxu0 0
  %144 = vmatpush.bf16.msra.mxu0 0
  %145 = vmatpush.bf16.msra.mxu0 0
  %146 = vmatpush.bf16.msra.mxu0 %v112
  %147 = vmatpush.bf16.msra.mxu0 %v111
  %148 = vmatpush.bf16.msra.mxu0 %v110
  %149 = vmatpush.bf16.msra.mxu0 %v109
  %150 = vmatmul.bf16.gmra.mxu0 %v127
  %v151 = vpop.f32.mrf.mxu0
  %v152 = vadd.f32 %v139, %v151
  %v153 = vpop.f32.mrf.mxu0
  %154 = vdwg.mxu0
  %v155 = vadd.f32 %v21, %v152
  %vm156 = vcmask 261120
  %157 = vst.msk [vmem:[#allocation2] sm:$0xff] %vm156, %v155
  // Predicated region
  $region18: #{_lambda_.18} parent=0 // pred_check
    %p158 = pneg %p15
  $region19: #{_lambda_.18} parent=0 // pred_check_branch
    %160 = sbr.rel (%p158) target = $region21
  $region20: #{_lambda_.18} parent=0 // pred_region
    %v161 = vld [vmem:[#allocation2] sm:$0xff]
    %v162 = vld [vmem:[%s2] sm:$0x1]
    %v164 = vperm.slane %v162, 0
    %v166 = vadd.f32 %v161, %v164
    %167 = vst.msk [vmem:[%s3] sm:$0xff] %vm156, %v166
  $region21: #{_lambda_.18} parent=0 // pred_fallthru
    _
  // Predicated region
  $region22: #{_lambda_.18} parent=0 // pred_check
    _
  $region23: #{_lambda_.18} parent=0 // pred_check_branch
    %169 = sbr.rel (0) target = $region25
  $region24: #{_lambda_.18} parent=0 // pred_region
    _
  $region25: #{_lambda_.18} parent=0 // pred_fallthru
    _
  // Predicated region
  $region26: #{_lambda_.18} parent=0 // pred_check
    _
  $region27: #{_lambda_.18} parent=0 // pred_check_branch
    %171 = sbr.rel (0) target = $region29
  $region28: #{_lambda_.18} parent=0 // pred_region
    _
  $region29: #{_lambda_.18} parent=0 // pred_fallthru
    _

// kernel: _lambda_.22
$region0: #{_lambda_.22}
  #allocation0 [shape = 'u32[]', space=smem, size = 0x4, offset = 0x4, fixed_abs, tag = 'smem constant byte address 0x4 - core index']
  #allocation1 [shape = 'u32[72,128]{1,0:T(1,128)}', space=vmem, size = 0x9000, scoped, tag = 'internal scratch']
  #allocation2 [shape = 'f32[16,32]{1,0:T(8,128)}', space=vmem, size = 0x2000, scoped, tag = 'scratch operand']
  %s0 = inlined_call_operand.vmem [shape: bf16[16,32], index: 0, kind: input, shape index: {}]
  %s1 = inlined_call_operand.vmem [shape: bf16[32,32], index: 1, kind: input, shape index: {}]
  %s2 = inlined_call_operand.vmem [shape: f32[1,32], index: 2, kind: input, shape index: {}]
  %s3 = inlined_call_operand.vmem [shape: f32[16,32], index: 3, kind: output, shape index: {}]
  %s4 = sld [smem:[#allocation0]]
  $region30: #{_lambda_.22} parent=0
    _
  %s6 = ssub.s32 1, %s4
  %s7 = scalar_select 0, %s6, %s4
  // Predicated region
  $region2: #{_lambda_.22} parent=0 // pred_check
    _
  $region3: #{_lambda_.22} parent=0 // pred_check_branch
    %9 = sbr.rel (0) target = $region5
  $region4: #{_lambda_.22} parent=0 // pred_region
    _
  $region5: #{_lambda_.22} parent=0 // pred_fallthru
    _
  // Predicated region
  $region6: #{_lambda_.22} parent=0 // pred_check
    _
  $region7: #{_lambda_.22} parent=0 // pred_check_branch
    %11 = sbr.rel (0) target = $region9
  $region8: #{_lambda_.22} parent=0 // pred_region
    _
  $region9: #{_lambda_.22} parent=0 // pred_fallthru
    _
  // Predicated region
  $region10: #{_lambda_.22} parent=0 // pred_check
    _
  $region11: #{_lambda_.22} parent=0 // pred_check_branch
    %13 = sbr.rel (0) target = $region13
  $region12: #{_lambda_.22} parent=0 // pred_region
    _
  $region13: #{_lambda_.22} parent=0 // pred_fallthru
    _
  %p15 = scmp.eq.s32.totalorder 0, 0
  // Predicated region
  $region14: #{_lambda_.22} parent=0 // pred_check
    %p16 = pneg %p15
  $region15: #{_lambda_.22} parent=0 // pred_check_branch
    %18 = sbr.rel (%p16) target = $region17
  $region16: #{_lambda_.22} parent=0 // pred_region
    %vm19 = vcmask 261120
    %20 = vst.msk [vmem:[#allocation2] sm:$0xff] %vm19, 0.0
    %21 = vst.msk [vmem:[#allocation2 + $0x8] sm:$0xff] %vm19, 0.0
  $region17: #{_lambda_.22} parent=0 // pred_fallthru
    _
  %v22 = vld [vmem:[#allocation2] sm:$0xff]
  %v23 = vld [vmem:[#allocation2 + $0x8] sm:$0xff]
  %v24 = vld [vmem:[%s0] sm:$0xf]
  %v25 = vld [vmem:[%s0 + $0x4] sm:$0xf]
  %v26 = vld [vmem:[%s1] sm:$0xf]
  %v27 = vld [vmem:[%s1 + $0x4] sm:$0xf]
  %v28 = vld [vmem:[%s1 + $0x8] sm:$0xf]
  %v29 = vld [vmem:[%s1 + $0xc] sm:$0xf]
  %v32 = vunpack.c.l.b16 %v24
  %v33 = vunpack.c.l.b16 %v25
  %v34 = vpack.c.b16 %v33, %v32
  %v39 = vunpack.c.l.b16 %v26
  %v40 = vunpack.c.l.b16 %v27
  %v41 = vunpack.c.l.b16 %v28
  %v42 = vunpack.c.l.b16 %v29
  %v43 = vpack.c.b16 %v40, %v39
  %v44 = vpack.c.b16 %v42, %v41
  %vm47 = vcmask 261120
  %v49 = vsel %vm47, %v34, 0
  %51 = vmatpush.bf16.msra.mxu0 0
  %52 = vmatpush.bf16.msra.mxu0 0
  %53 = vmatpush.bf16.msra.mxu0 0
  %54 = vmatpush.bf16.msra.mxu0 0
  %55 = vmatpush.bf16.msra.mxu0 0
  %56 = vmatpush.bf16.msra.mxu0 0
  %57 = vmatpush.bf16.msra.mxu0 %v44
  %58 = vmatpush.bf16.msra.mxu0 %v43
  %59 = vmatmul.bf16.gmra.mxu0 %v49
  %v60 = vpop.f32.mrf.mxu0
  %v61 = vadd.f32 0.0, %v60
  %v62 = vpop.f32.mrf.mxu0
  %v63 = vadd.f32 0.0, %v62
  %64 = vdwg.mxu0
  %v65 = vadd.f32 %v22, %v61
  %v66 = vadd.f32 %v23, %v63
  %67 = vst.msk [vmem:[#allocation2] sm:$0xff] %vm47, %v65
  %68 = vst.msk [vmem:[#allocation2 + $0x8] sm:$0xff] %vm47, %v66
  // Predicated region
  $region18: #{_lambda_.22} parent=0 // pred_check
    %p69 = pneg %p15
  $region19: #{_lambda_.22} parent=0 // pred_check_branch
    %71 = sbr.rel (%p69) target = $region21
  $region20: #{_lambda_.22} parent=0 // pred_region
    %v72 = vld [vmem:[#allocation2] sm:$0xff]
    %v73 = vld [vmem:[#allocation2 + $0x8] sm:$0xff]
    %v74 = vld [vmem:[%s2] sm:$0x1]
    %v76 = vperm.slane %v74, 0
    %v78 = vadd.f32 %v72, %v76
    %v79 = vadd.f32 %v73, %v76
    %80 = vst.msk [vmem:[%s3] sm:$0xff] %vm47, %v78
    %81 = vst.msk [vmem:[%s3 + $0x8] sm:$0xff] %vm47, %v79
  $region21: #{_lambda_.22} parent=0 // pred_fallthru
    _
  // Predicated region
  $region22: #{_lambda_.22} parent=0 // pred_check
    _
  $region23: #{_lambda_.22} parent=0 // pred_check_branch
    %83 = sbr.rel (0) target = $region25
  $region24: #{_lambda_.22} parent=0 // pred_region
    _
  $region25: #{_lambda_.22} parent=0 // pred_fallthru
    _
  // Predicated region
  $region26: #{_lambda_.22} parent=0 // pred_check
    _
  $region27: #{_lambda_.22} parent=0 // pred_check_branch
    %85 = sbr.rel (0) target = $region29
  $region28: #{_lambda_.22} parent=0 // pred_region
    _
  $region29: #{_lambda_.22} parent=0 // pred_fallthru
    _

// kernel: _lambda_.24
$region0: #{_lambda_.24}
  #allocation0 [shape = 'u32[]', space=smem, size = 0x4, offset = 0x4, fixed_abs, tag = 'smem constant byte address 0x4 - core index']
  #allocation1 [shape = 'u32[72,128]{1,0:T(1,128)}', space=vmem, size = 0x9000, scoped, tag = 'internal scratch']
  #allocation2 [shape = 'f32[16,128]{1,0:T(8,128)}', space=vmem, size = 0x2000, scoped, tag = 'scratch operand']
  %s0 = inlined_call_operand.vmem [shape: bf16[16,32], index: 0, kind: input, shape index: {}]
  %s1 = inlined_call_operand.vmem [shape: bf16[32,128], index: 1, kind: input, shape index: {}]
  %s2 = inlined_call_operand.vmem [shape: f32[1,128], index: 2, kind: input, shape index: {}]
  %s3 = inlined_call_operand.vmem [shape: f32[16,128], index: 3, kind: output, shape index: {}]
  %s4 = sld [smem:[#allocation0]]
  $region30: #{_lambda_.24} parent=0
    _
  %s6 = ssub.s32 1, %s4
  %s7 = scalar_select 0, %s6, %s4
  // Predicated region
  $region2: #{_lambda_.24} parent=0 // pred_check
    _
  $region3: #{_lambda_.24} parent=0 // pred_check_branch
    %9 = sbr.rel (0) target = $region5
  $region4: #{_lambda_.24} parent=0 // pred_region
    _
  $region5: #{_lambda_.24} parent=0 // pred_fallthru
    _
  // Predicated region
  $region6: #{_lambda_.24} parent=0 // pred_check
    _
  $region7: #{_lambda_.24} parent=0 // pred_check_branch
    %11 = sbr.rel (0) target = $region9
  $region8: #{_lambda_.24} parent=0 // pred_region
    _
  $region9: #{_lambda_.24} parent=0 // pred_fallthru
    _
  // Predicated region
  $region10: #{_lambda_.24} parent=0 // pred_check
    _
  $region11: #{_lambda_.24} parent=0 // pred_check_branch
    %13 = sbr.rel (0) target = $region13
  $region12: #{_lambda_.24} parent=0 // pred_region
    _
  $region13: #{_lambda_.24} parent=0 // pred_fallthru
    _
  %p15 = scmp.eq.s32.totalorder 0, 0
  // Predicated region
  $region14: #{_lambda_.24} parent=0 // pred_check
    %p16 = pneg %p15
  $region15: #{_lambda_.24} parent=0 // pred_check_branch
    %18 = sbr.rel (%p16) target = $region17
  $region16: #{_lambda_.24} parent=0 // pred_region
    %19 = vst [vmem:[#allocation2] sm:$0xff] 0.0
    %20 = vst [vmem:[#allocation2 + $0x8] sm:$0xff] 0.0
  $region17: #{_lambda_.24} parent=0 // pred_fallthru
    _
  %v21 = vld [vmem:[#allocation2] sm:$0xff]
  %v22 = vld [vmem:[#allocation2 + $0x8] sm:$0xff]
  %v23 = vld [vmem:[%s0] sm:$0xf]
  %v24 = vld [vmem:[%s0 + $0x4] sm:$0xf]
  %v25 = vld [vmem:[%s1] sm:$0xf]
  %v26 = vld [vmem:[%s1 + $0x4] sm:$0xf]
  %v27 = vld [vmem:[%s1 + $0x8] sm:$0xf]
  %v28 = vld [vmem:[%s1 + $0xc] sm:$0xf]
  %v31 = vunpack.c.l.b16 %v23
  %v32 = vunpack.c.l.b16 %v24
  %v33 = vpack.c.b16 %v32, %v31
  %v38 = vunpack.c.l.b16 %v25
  %v39 = vunpack.c.l.b16 %v26
  %v40 = vunpack.c.l.b16 %v27
  %v41 = vunpack.c.l.b16 %v28
  %v42 = vpack.c.b16 %v39, %v38
  %v43 = vpack.c.b16 %v41, %v40
  %vm46 = vcmask 261120
  %v48 = vsel %vm46, %v33, 0
  %50 = vmatpush.bf16.msra.mxu0 0
  %51 = vmatpush.bf16.msra.mxu0 0
  %52 = vmatpush.bf16.msra.mxu0 0
  %53 = vmatpush.bf16.msra.mxu0 0
  %54 = vmatpush.bf16.msra.mxu0 0
  %55 = vmatpush.bf16.msra.mxu0 0
  %56 = vmatpush.bf16.msra.mxu0 %v43
  %57 = vmatpush.bf16.msra.mxu0 %v42
  %58 = vmatmul.bf16.gmra.mxu0 %v48
  %v59 = vpop.f32.mrf.mxu0
  %v60 = vadd.f32 0.0, %v59
  %v61 = vpop.f32.mrf.mxu0
  %v62 = vadd.f32 0.0, %v61
  %63 = vdwg.mxu0
  %v64 = vadd.f32 %v21, %v60
  %v65 = vadd.f32 %v22, %v62
  %66 = vst [vmem:[#allocation2] sm:$0xff] %v64
  %67 = vst [vmem:[#allocation2 + $0x8] sm:$0xff] %v65
  // Predicated region
  $region18: #{_lambda_.24} parent=0 // pred_check
    %p68 = pneg %p15
  $region19: #{_lambda_.24} parent=0 // pred_check_branch
    %70 = sbr.rel (%p68) target = $region21
  $region20: #{_lambda_.24} parent=0 // pred_region
    %v71 = vld [vmem:[#allocation2] sm:$0xff]
    %v72 = vld [vmem:[#allocation2 + $0x8] sm:$0xff]
    %v73 = vld [vmem:[%s2] sm:$0x1]
    %v75 = vperm.slane %v73, 0
    %v77 = vadd.f32 %v71, %v75
    %v78 = vadd.f32 %v72, %v75
    %v79 = vmul.f32 %v77, %v77
    %v80 = vmul.f32 %v78, %v78
    %v81 = vmul.f32 %v77, %v79
    %v82 = vmul.f32 %v78, %v80
    %v83 = vmul.f32 %v81, 0.044715
    %v84 = vmul.f32 %v82, 0.044715
    %v85 = vadd.f32 %v77, %v83
    %v86 = vadd.f32 %v78, %v84
    %v87 = vmul.f32 %v85, 0.7978846
    %v88 = vmul.f32 %v86, 0.7978846
    %v89 = vtanh.pop %v87
    %v90 = vtanh.pop %v88
    %v91 = vadd.f32 %v89, 1.0
    %v92 = vadd.f32 %v90, 1.0
    %v93 = vmul.f32 %v91, 0.5
    %v94 = vmul.f32 %v92, 0.5
    %v95 = vmul.f32 %v77, %v93
    %v96 = vmul.f32 %v78, %v94
    %97 = vst [vmem:[%s3] sm:$0xff] %v95
    %98 = vst [vmem:[%s3 + $0x8] sm:$0xff] %v96
  $region21: #{_lambda_.24} parent=0 // pred_fallthru
    _
  // Predicated region
  $region22: #{_lambda_.24} parent=0 // pred_check
    _
  $region23: #{_lambda_.24} parent=0 // pred_check_branch
    %100 = sbr.rel (0) target = $region25
  $region24: #{_lambda_.24} parent=0 // pred_region
    _
  $region25: #{_lambda_.24} parent=0 // pred_fallthru
    _
  // Predicated region
  $region26: #{_lambda_.24} parent=0 // pred_check
    _
  $region27: #{_lambda_.24} parent=0 // pred_check_branch
    %102 = sbr.rel (0) target = $region29
  $region28: #{_lambda_.24} parent=0 // pred_region
    _
  $region29: #{_lambda_.24} parent=0 // pred_fallthru
    _

// kernel: _lambda_.25
$region0: #{_lambda_.25}
  #allocation0 [shape = 'u32[]', space=smem, size = 0x4, offset = 0x4, fixed_abs, tag = 'smem constant byte address 0x4 - core index']
  #allocation1 [shape = 'u32[72,128]{1,0:T(1,128)}', space=vmem, size = 0x9000, scoped, tag = 'internal scratch']
  #allocation2 [shape = 'f32[16,32]{1,0:T(8,128)}', space=vmem, size = 0x2000, scoped, tag = 'scratch operand']
  %s0 = inlined_call_operand.vmem [shape: bf16[16,128], index: 0, kind: input, shape index: {}]
  %s1 = inlined_call_operand.vmem [shape: bf16[128,32], index: 1, kind: input, shape index: {}]
  %s2 = inlined_call_operand.vmem [shape: f32[1,32], index: 2, kind: input, shape index: {}]
  %s3 = inlined_call_operand.vmem [shape: f32[16,32], index: 3, kind: output, shape index: {}]
  %s4 = sld [smem:[#allocation0]]
  $region30: #{_lambda_.25} parent=0
    _
  %s6 = ssub.s32 1, %s4
  %s7 = scalar_select 0, %s6, %s4
  // Predicated region
  $region2: #{_lambda_.25} parent=0 // pred_check
    _
  $region3: #{_lambda_.25} parent=0 // pred_check_branch
    %9 = sbr.rel (0) target = $region5
  $region4: #{_lambda_.25} parent=0 // pred_region
    _
  $region5: #{_lambda_.25} parent=0 // pred_fallthru
    _
  // Predicated region
  $region6: #{_lambda_.25} parent=0 // pred_check
    _
  $region7: #{_lambda_.25} parent=0 // pred_check_branch
    %11 = sbr.rel (0) target = $region9
  $region8: #{_lambda_.25} parent=0 // pred_region
    _
  $region9: #{_lambda_.25} parent=0 // pred_fallthru
    _
  // Predicated region
  $region10: #{_lambda_.25} parent=0 // pred_check
    _
  $region11: #{_lambda_.25} parent=0 // pred_check_branch
    %13 = sbr.rel (0) target = $region13
  $region12: #{_lambda_.25} parent=0 // pred_region
    _
  $region13: #{_lambda_.25} parent=0 // pred_fallthru
    _
  %p14 = scmp.eq.s32.totalorder 0, 0
  // Predicated region
  $region14: #{_lambda_.25} parent=0 // pred_check
    %p15 = pneg %p14
  $region15: #{_lambda_.25} parent=0 // pred_check_branch
    %17 = sbr.rel (%p15) target = $region17
  $region16: #{_lambda_.25} parent=0 // pred_region
    %vm18 = vcmask 261120
    %19 = vst.msk [vmem:[#allocation2] sm:$0xff] %vm18, 0.0
    %20 = vst.msk [vmem:[#allocation2 + $0x8] sm:$0xff] %vm18, 0.0
  $region17: #{_lambda_.25} parent=0 // pred_fallthru
    _
  %v21 = vld [vmem:[#allocation2] sm:$0xff]
  %v22 = vld [vmem:[#allocation2 + $0x8] sm:$0xff]
  %v23 = vld [vmem:[%s0] sm:$0xf]
  %v24 = vld [vmem:[%s0 + $0x4] sm:$0xf]
  %v25 = vld [vmem:[%s1] sm:$0xf]
  %v26 = vld [vmem:[%s1 + $0x4] sm:$0xf]
  %v27 = vld [vmem:[%s1 + $0x8] sm:$0xf]
  %v28 = vld [vmem:[%s1 + $0xc] sm:$0xf]
  %v29 = vld [vmem:[%s1 + $0x10] sm:$0xf]
  %v30 = vld [vmem:[%s1 + $0x14] sm:$0xf]
  %v31 = vld [vmem:[%s1 + $0x18] sm:$0xf]
  %v32 = vld [vmem:[%s1 + $0x1c] sm:$0xf]
  %v33 = vld [vmem:[%s1 + $0x20] sm:$0xf]
  %v34 = vld [vmem:[%s1 + $0x24] sm:$0xf]
  %v35 = vld [vmem:[%s1 + $0x28] sm:$0xf]
  %v36 = vld [vmem:[%s1 + $0x2c] sm:$0xf]
  %v37 = vld [vmem:[%s1 + $0x30] sm:$0xf]
  %v38 = vld [vmem:[%s1 + $0x34] sm:$0xf]
  %v39 = vld [vmem:[%s1 + $0x38] sm:$0xf]
  %v40 = vld [vmem:[%s1 + $0x3c] sm:$0xf]
  %v43 = vunpack.c.l.b16 %v23
  %v44 = vunpack.c.l.b16 %v24
  %v45 = vpack.c.b16 %v44, %v43
  %v63 = vunpack.c.l.b16 %v25
  %v64 = vunpack.c.l.b16 %v26
  %v65 = vunpack.c.l.b16 %v27
  %v66 = vunpack.c.l.b16 %v28
  %v67 = vunpack.c.l.b16 %v29
  %v68 = vunpack.c.l.b16 %v30
  %v69 = vunpack.c.l.b16 %v31
  %v70 = vunpack.c.l.b16 %v32
  %v71 = vunpack.c.l.b16 %v33
  %v72 = vunpack.c.l.b16 %v34
  %v73 = vunpack.c.l.b16 %v35
  %v74 = vunpack.c.l.b16 %v36
  %v75 = vunpack.c.l.b16 %v37
  %v76 = vunpack.c.l.b16 %v38
  %v77 = vunpack.c.l.b16 %v39
  %v78 = vunpack.c.l.b16 %v40
  %v79 = vpack.c.b16 %v64, %v63
  %v80 = vpack.c.b16 %v66, %v65
  %v81 = vpack.c.b16 %v68, %v67
  %v82 = vpack.c.b16 %v70, %v69
  %v83 = vpack.c.b16 %v72, %v71
  %v84 = vpack.c.b16 %v74, %v73
  %v85 = vpack.c.b16 %v76, %v75
  %v86 = vpack.c.b16 %v78, %v77
  %95 = vmatpush.bf16.msra.mxu0 %v86
  %96 = vmatpush.bf16.msra.mxu0 %v85
  %97 = vmatpush.bf16.msra.mxu0 %v84
  %98 = vmatpush.bf16.msra.mxu0 %v83
  %99 = vmatpush.bf16.msra.mxu0 %v82
  %100 = vmatpush.bf16.msra.mxu0 %v81
  %101 = vmatpush.bf16.msra.mxu0 %v80
  %102 = vmatpush.bf16.msra.mxu0 %v79
  %103 = vmatmul.bf16.gmra.mxu0 %v45
  %v104 = vpop.f32.mrf.mxu0
  %v105 = vadd.f32 0.0, %v104
  %v106 = vpop.f32.mrf.mxu0
  %v107 = vadd.f32 0.0, %v106
  %108 = vdwg.mxu0
  %v109 = vadd.f32 %v21, %v105
  %v110 = vadd.f32 %v22, %v107
  %vm111 = vcmask 261120
  %112 = vst.msk [vmem:[#allocation2] sm:$0xff] %vm111, %v109
  %113 = vst.msk [vmem:[#allocation2 + $0x8] sm:$0xff] %vm111, %v110
  // Predicated region
  $region18: #{_lambda_.25} parent=0 // pred_check
    %p114 = pneg %p14
  $region19: #{_lambda_.25} parent=0 // pred_check_branch
    %116 = sbr.rel (%p114) target = $region21
  $region20: #{_lambda_.25} parent=0 // pred_region
    %v117 = vld [vmem:[#allocation2] sm:$0xff]
    %v118 = vld [vmem:[#allocation2 + $0x8] sm:$0xff]
    %v119 = vld [vmem:[%s2] sm:$0x1]
    %v121 = vperm.slane %v119, 0
    %v123 = vadd.f32 %v117, %v121
    %v124 = vadd.f32 %v118, %v121
    %125 = vst.msk [vmem:[%s3] sm:$0xff] %vm111, %v123
    %126 = vst.msk [vmem:[%s3 + $0x8] sm:$0xff] %vm111, %v124
  $region21: #{_lambda_.25} parent=0 // pred_fallthru
    _
  // Predicated region
  $region22: #{_lambda_.25} parent=0 // pred_check
    _
  $region23: #{_lambda_.25} parent=0 // pred_check_branch
    %128 = sbr.rel (0) target = $region25
  $region24: #{_lambda_.25} parent=0 // pred_region
    _
  $region25: #{_lambda_.25} parent=0 // pred_fallthru
    _
  // Predicated region
  $region26: #{_lambda_.25} parent=0 // pred_check
    _
  $region27: #{_lambda_.25} parent=0 // pred_check_branch
    %130 = sbr.rel (0) target = $region29
  $region28: #{_lambda_.25} parent=0 // pred_region
    _
  $region29: #{_lambda_.25} parent=0 // pred_fallthru
    _

// kernel: _lambda_.35
$region0: #{_lambda_.35}
  #allocation0 [shape = 'u32[]', space=smem, size = 0x4, offset = 0x4, fixed_abs, tag = 'smem constant byte address 0x4 - core index']
  #allocation1 [shape = 'u32[72,128]{1,0:T(1,128)}', space=vmem, size = 0x9000, scoped, tag = 'internal scratch']
  #allocation2 [shape = 'f32[8,8]{1,0:T(8,128)}', space=vmem, size = 0x1000, scoped, tag = 'scratch operand']
  %s0 = inlined_call_operand.vmem [shape: bf16[8,32], index: 0, kind: input, shape index: {}]
  %s1 = inlined_call_operand.vmem [shape: bf16[32,8], index: 1, kind: input, shape index: {}]
  %s2 = inlined_call_operand.vmem [shape: f32[1,8], index: 2, kind: input, shape index: {}]
  %s3 = inlined_call_operand.vmem [shape: f32[8,8], index: 3, kind: output, shape index: {}]
  %s4 = sld [smem:[#allocation0]]
  $region30: #{_lambda_.35} parent=0
    _
  %s6 = ssub.s32 1, %s4
  %s7 = scalar_select 0, %s6, %s4
  // Predicated region
  $region2: #{_lambda_.35} parent=0 // pred_check
    _
  $region3: #{_lambda_.35} parent=0 // pred_check_branch
    %9 = sbr.rel (0) target = $region5
  $region4: #{_lambda_.35} parent=0 // pred_region
    _
  $region5: #{_lambda_.35} parent=0 // pred_fallthru
    _
  // Predicated region
  $region6: #{_lambda_.35} parent=0 // pred_check
    _
  $region7: #{_lambda_.35} parent=0 // pred_check_branch
    %11 = sbr.rel (0) target = $region9
  $region8: #{_lambda_.35} parent=0 // pred_region
    _
  $region9: #{_lambda_.35} parent=0 // pred_fallthru
    _
  // Predicated region
  $region10: #{_lambda_.35} parent=0 // pred_check
    _
  $region11: #{_lambda_.35} parent=0 // pred_check_branch
    %13 = sbr.rel (0) target = $region13
  $region12: #{_lambda_.35} parent=0 // pred_region
    _
  $region13: #{_lambda_.35} parent=0 // pred_fallthru
    _
  %p15 = scmp.eq.s32.totalorder 0, 0
  // Predicated region
  $region14: #{_lambda_.35} parent=0 // pred_check
    %p16 = pneg %p15
  $region15: #{_lambda_.35} parent=0 // pred_check_branch
    %18 = sbr.rel (%p16) target = $region17
  $region16: #{_lambda_.35} parent=0 // pred_region
    %vm19 = vcmask 64512
    %20 = vst.msk [vmem:[#allocation2] sm:$0xff] %vm19, 0.0
  $region17: #{_lambda_.35} parent=0 // pred_fallthru
    _
  %v21 = vld [vmem:[#allocation2] sm:$0xff]
  %v22 = vld [vmem:[%s0] sm:$0xf]
  %v23 = vld [vmem:[%s1] sm:$0xf]
  %v24 = vld [vmem:[%s1 + $0x4] sm:$0xf]
  %v25 = vld [vmem:[%s1 + $0x8] sm:$0xf]
  %v26 = vld [vmem:[%s1 + $0xc] sm:$0xf]
  %v31 = vunpack.c.l.b16 %v23
  %v32 = vunpack.c.l.b16 %v24
  %v33 = vunpack.c.l.b16 %v25
  %v34 = vunpack.c.l.b16 %v26
  %v35 = vpack.c.b16 %v32, %v31
  %v36 = vpack.c.b16 %v34, %v33
  %vm39 = vcmask 261120
  %v41 = vsel %vm39, %v22, 0
  %43 = vmatpush.bf16.msra.mxu0 0
  %44 = vmatpush.bf16.msra.mxu0 0
  %45 = vmatpush.bf16.msra.mxu0 0
  %46 = vmatpush.bf16.msra.mxu0 0
  %47 = vmatpush.bf16.msra.mxu0 0
  %48 = vmatpush.bf16.msra.mxu0 0
  %49 = vmatpush.bf16.msra.mxu0 %v36
  %50 = vmatpush.bf16.msra.mxu0 %v35
  %51 = vmatmul.bf16.gmra.mxu0 %v41
  %v52 = vpop.f32.mrf.mxu0
  %v53 = vadd.f32 0.0, %v52
  %v54 = vpop.f32.mrf.mxu0
  %55 = vdwg.mxu0
  %v56 = vadd.f32 %v21, %v53
  %vm57 = vcmask 64512
  %58 = vst.msk [vmem:[#allocation2] sm:$0xff] %vm57, %v56
  // Predicated region
  $region18: #{_lambda_.35} parent=0 // pred_check
    %p59 = pneg %p15
  $region19: #{_lambda_.35} parent=0 // pred_check_branch
    %61 = sbr.rel (%p59) target = $region21
  $region20: #{_lambda_.35} parent=0 // pred_region
    %v62 = vld [vmem:[#allocation2] sm:$0xff]
    %v63 = vld [vmem:[%s2] sm:$0x1]
    %v65 = vperm.slane %v63, 0
    %v67 = vadd.f32 %v62, %v65
    %68 = vst.msk [vmem:[%s3] sm:$0xff] %vm57, %v67
  $region21: #{_lambda_.35} parent=0 // pred_fallthru
    _
  // Predicated region
  $region22: #{_lambda_.35} parent=0 // pred_check
    _
  $region23: #{_lambda_.35} parent=0 // pred_check_branch
    %70 = sbr.rel (0) target = $region25
  $region24: #{_lambda_.35} parent=0 // pred_region
    _
  $region25: #{_lambda_.35} parent=0 // pred_fallthru
    _
  // Predicated region
  $region26: #{_lambda_.35} parent=0 // pred_check
    _
  $region27: #{_lambda_.35} parent=0 // pred_check_branch
    %72 = sbr.rel (0) target = $region29
  $region28: #{_lambda_.35} parent=0 // pred_region
    _
  $region29: #{_lambda_.35} parent=0 // pred_fallthru
    _

</llo_original>
